<compile_context>
chip_gen: v7x
topology: tpu7x:2x2x1
jax: 0.10.0
libtpu: 0.0.40
codegen_flags: <defaults>
</compile_context>

<pallas_src>
import functools
import math

import jax
import jax.numpy as jnp
from jax.experimental import pallas as pl
from jax.experimental.pallas import tpu as pltpu

_LANE = 128
_SUBLANE = 8


def _round_up(v: int, m: int) -> int:
    return (v + m - 1) // m * m


def _pad2(a, rows: int, cols: int):
    """Zero-pad a 2-D array up to (rows, cols)."""
    r, c = a.shape
    return jnp.pad(a, ((0, rows - r), (0, cols - c)))


def _vmem_limit_bytes() -> int:
    """~80% of this generation's VMEM capacity (v5e/v6e 128 MiB, v7x 64 MiB)."""
    try:
        cap = int(pltpu.get_tpu_info().vmem_capacity_bytes)
        if cap <= 0:
            raise ValueError("bad vmem capacity")
    except Exception:  # not on TPU / API unavailable: conservative default
        cap = 64 * 1024 * 1024
    return min(int(cap * 0.8), 100 * 1024 * 1024)


def _log_softmax_masked(z, num_classes: int):
    """log_softmax over axis 1 with zero-padded class columns masked to -inf
    inside the reduction only (the store stays lane-dense / full width)."""
    cols = jax.lax.broadcasted_iota(jnp.int32, z.shape, 1)
    z_m = jnp.where(cols < num_classes, z, -jnp.inf)
    m = jnp.max(z_m, axis=1, keepdims=True)
    lse = m + jnp.log(jnp.sum(jnp.exp(z_m - m), axis=1, keepdims=True))
    return z - lse


# --------------------------------------------------------------------------
# Kernels
# --------------------------------------------------------------------------
def _fused_small_kernel(a_ref, x_ref, w1_ref, b1_ref, w2_ref, b2_ref, o_ref,
                        *, num_classes):
    """Whole GCN forward with everything VMEM-resident (A read once)."""
    xw = jnp.dot(x_ref[...], w1_ref[...],
                 preferred_element_type=jnp.float32).astype(jnp.bfloat16)
    h = jnp.maximum(
        jnp.dot(a_ref[...], xw, preferred_element_type=jnp.float32)
        + b1_ref[...], 0.0)
    hw2 = jnp.dot(h.astype(jnp.bfloat16), w2_ref[...],
                  preferred_element_type=jnp.float32).astype(jnp.bfloat16)
    z = jnp.dot(a_ref[...], hw2, preferred_element_type=jnp.float32) + b2_ref[...]
    o_ref[...] = _log_softmax_masked(z, num_classes)


def _transform_kernel(x_ref, w_ref, o_ref):
    """o = x_tile @ W   (bf16 inputs, f32 accumulation, bf16 output)."""
    o_ref[...] = jnp.dot(
        x_ref[...], w_ref[...], preferred_element_type=jnp.float32
    ).astype(o_ref.dtype)


def _agg_relu_transform_kernel(a_ref, xw_ref, b1_ref, w2_ref, o_ref, acc_ref):
    """K-tiled: acc += A_blk @ XW_blk; at last K: o = relu(acc + b1) @ W2."""
    k = pl.program_id(1)

    @pl.when(k == 0)
    def _():
        acc_ref[...] = jnp.zeros_like(acc_ref)

    acc_ref[...] += jnp.dot(a_ref[...], xw_ref[...],
                            preferred_element_type=jnp.float32)

    @pl.when(k == pl.num_programs(1) - 1)
    def _():
        h = jnp.maximum(acc_ref[...] + b1_ref[...], 0.0)   # f32 bias + ReLU
        o_ref[...] = jnp.dot(h.astype(jnp.bfloat16), w2_ref[...],
                             preferred_element_type=jnp.float32
                             ).astype(o_ref.dtype)


def _agg_logsoftmax_kernel(a_ref, hw_ref, b2_ref, o_ref, acc_ref, *, num_classes):
    """K-tiled: acc += A_blk @ HW2_blk; at last K: o = log_softmax(acc + b2)."""
    k = pl.program_id(1)

    @pl.when(k == 0)
    def _():
        acc_ref[...] = jnp.zeros_like(acc_ref)

    acc_ref[...] += jnp.dot(a_ref[...], hw_ref[...],
                            preferred_element_type=jnp.float32)

    @pl.when(k == pl.num_programs(1) - 1)
    def _():
        o_ref[...] = _log_softmax_masked(acc_ref[...] + b2_ref[...], num_classes)


# --------------------------------------------------------------------------
# Wrapper
# --------------------------------------------------------------------------
def gnn_forward(a_hat, x, w1, b1, w2, b2, *,
                row_tile: int = 256, k_tile: int = 1024,
                force_tiled: bool = False):
    """Fused 2-layer GCN forward (eval mode) + log_softmax.

    a_hat : (N, N) f32 normalized adjacency (A_hat[target, source])
    x     : (N, Fin) f32
    w1    : (Fin, H) f32,  b1 : (1, H) f32
    w2    : (H, C)  f32,   b2 : (1, C) f32
    returns (N, C) f32 log-probabilities
    """
    N, Fin = x.shape
    H = w1.shape[1]
    C = w2.shape[1]

    # Lane-dense padding of every feature / class dim.
    f_p = _round_up(max(Fin, _LANE), _LANE)
    h_p = _round_up(max(H, _LANE), _LANE)
    c_p = _round_up(max(C, _LANE), _LANE)

    vmem_limit = _vmem_limit_bytes()

    # ---- Small-graph path: single fused kernel, A read from HBM once --------
    n_f = _round_up(N, _LANE)
    fused_bytes = (n_f * n_f * 2                 # A bf16
                   + n_f * f_p * 2               # X bf16
                   + n_f * h_p * 10              # xw f32/bf16, h f32
                   + n_f * c_p * 14              # hw2, z, out
                   + (f_p * h_p + h_p * c_p) * 2 + (h_p + c_p) * 4)
    if (not force_tiled) and fused_bytes <= int(0.4 * vmem_limit):
        a_p = _pad2(a_hat, n_f, n_f).astype(jnp.bfloat16)
        x_p = _pad2(x, n_f, f_p).astype(jnp.bfloat16)
        w1_p = _pad2(w1, f_p, h_p).astype(jnp.bfloat16)
        w2_p = _pad2(w2, h_p, c_p).astype(jnp.bfloat16)
        b1_p = _pad2(b1, 1, h_p).astype(jnp.float32)
        b2_p = _pad2(b2, 1, c_p).astype(jnp.float32)

        vmem_spec = pl.BlockSpec(memory_space=pltpu.MemorySpace.VMEM)
        out_p = pl.pallas_call(
            functools.partial(_fused_small_kernel, num_classes=C),
            out_shape=jax.ShapeDtypeStruct((n_f, c_p), jnp.float32),
            in_specs=[vmem_spec] * 6,
            out_specs=vmem_spec,
            compiler_params=pltpu.CompilerParams(vmem_limit_bytes=vmem_limit),
        )(a_p, x_p, w1_p, b1_p, w2_p, b2_p)
        return out_p[:N, :C]

    # ---- Large-graph path: row-parallel, K-tiled aggregation ----------------
    # tm: multiple of 8 sublanes.  tk: multiple of lcm(tm, 128) so that a single
    # padded N (n_p) divides evenly by both grid tile sizes.
    tm = max(_SUBLANE, min(int(row_tile), _round_up(N, _SUBLANE)))
    tm = _round_up(tm, _SUBLANE)
    k_step = tm * _LANE // math.gcd(tm, _LANE)          # lcm(tm, 128)
    tk = min(int(k_tile), _round_up(N, k_step))
    tk = _round_up(max(tk, k_step), k_step)
    n_p = _round_up(N, tk)                              # multiple of tm and tk

    # bf16 matmul operands, f32 biases.
    a_p = _pad2(a_hat, n_p, n_p).astype(jnp.bfloat16)
    x_p = _pad2(x, n_p, f_p).astype(jnp.bfloat16)
    w1_p = _pad2(w1, f_p, h_p).astype(jnp.bfloat16)
    w2_p = _pad2(w2, h_p, c_p).astype(jnp.bfloat16)
    b1_p = _pad2(b1, 1, h_p).astype(jnp.float32)
    b2_p = _pad2(b2, 1, c_p).astype(jnp.float32)

    row_grid = n_p // tm
    k_grid = n_p // tk
    params_rows = pltpu.CompilerParams(
        dimension_semantics=("parallel",), vmem_limit_bytes=vmem_limit)
    params_rows_k = pltpu.CompilerParams(
        dimension_semantics=("parallel", "arbitrary"),   # rows megacore-shard,
        vmem_limit_bytes=vmem_limit)                     # K is the reduction

    # --- 1) XW = X @ W1  (row tiles of X) ------------------------------------
    xw = pl.pallas_call(
        _transform_kernel,
        out_shape=jax.ShapeDtypeStruct((n_p, h_p), jnp.bfloat16),
        grid_spec=pltpu.PrefetchScalarGridSpec(
            num_scalar_prefetch=0,
            grid=(row_grid,),
            in_specs=[
                pl.BlockSpec((tm, f_p), lambda i: (i, 0)),
                pl.BlockSpec((f_p, h_p), lambda i: (0, 0)),
            ],
            out_specs=pl.BlockSpec((tm, h_p), lambda i: (i, 0)),
        ),
        compiler_params=params_rows,
    )(x_p, w1_p)

    # --- 2) HW2 = relu(A @ XW + b1) @ W2  (rows x K grid, f32 accumulator) ---
    hw2 = pl.pallas_call(
        _agg_relu_transform_kernel,
        out_shape=jax.ShapeDtypeStruct((n_p, c_p), jnp.bfloat16),
        grid_spec=pltpu.PrefetchScalarGridSpec(
            num_scalar_prefetch=0,
            grid=(row_grid, k_grid),
            in_specs=[
                pl.BlockSpec((tm, tk), lambda i, k: (i, k)),    # A block
                pl.BlockSpec((tk, h_p), lambda i, k: (k, 0)),   # XW K-slab
                pl.BlockSpec((1, h_p), lambda i, k: (0, 0)),    # b1
                pl.BlockSpec((h_p, c_p), lambda i, k: (0, 0)),  # W2
            ],
            out_specs=pl.BlockSpec((tm, c_p), lambda i, k: (i, 0)),
            scratch_shapes=[pltpu.VMEM((tm, h_p), jnp.float32)],
        ),
        compiler_params=params_rows_k,
    )(a_p, xw, b1_p, w2_p)

    # --- 3) OUT = log_softmax(A @ HW2 + b2)  (rows x K grid) -----------------
    out_p = pl.pallas_call(
        functools.partial(_agg_logsoftmax_kernel, num_classes=C),
        out_shape=jax.ShapeDtypeStruct((n_p, c_p), jnp.float32),
        grid_spec=pltpu.PrefetchScalarGridSpec(
            num_scalar_prefetch=0,
            grid=(row_grid, k_grid),
            in_specs=[
                pl.BlockSpec((tm, tk), lambda i, k: (i, k)),    # A block
                pl.BlockSpec((tk, c_p), lambda i, k: (k, 0)),   # HW2 K-slab
                pl.BlockSpec((1, c_p), lambda i, k: (0, 0)),    # b2
            ],
            out_specs=pl.BlockSpec((tm, c_p), lambda i, k: (i, 0)),
            scratch_shapes=[pltpu.VMEM((tm, c_p), jnp.float32)],
        ),
        compiler_params=params_rows_k,
    )(a_p, hw2, b2_p)

    # Strip row / class padding.
    return out_p[:N, :C]


# --------------------------------------------------------------------------
# Host-side graph preprocessing (PyG gcn_norm semantics)
# --------------------------------------------------------------------------
def build_normalized_adjacency(edge_index, num_nodes):
    """Dense D^{-1/2} (A + I) D^{-1/2} from a (2, E) edge_index (src, dst).

    Matches PyG defaults: non-loop parallel edges are scatter-added, while
    add_remaining_self_loops drops all existing self-loop edges and adds
    exactly one unit self-loop per node.
    """
    src, dst = edge_index[0], edge_index[1]
    a = jnp.zeros((num_nodes, num_nodes), jnp.float32).at[dst, src].add(1.0)
    eye = jnp.eye(num_nodes, dtype=jnp.float32)
    a = a * (1.0 - eye) + eye                            # canonical self-loops
    deg = jnp.sum(a, axis=1)                             # target degree incl. loop
    dinv = jnp.where(deg > 0.0, jax.lax.rsqrt(deg), 0.0)
    return dinv[:, None] * a * dinv[None, :]


# --------------------------------------------------------------------------
# Demo / self-check
# --------------------------------------------------------------------------
if __name__ == "__main__":
    # Small synthetic problem consistent with GNNModel(in, hidden, 'GCN', out=2).
    N, in_channels, hidden_channels, out_channels = 256, 8, 32, 2
    E = 1024

    key = jax.random.PRNGKey(0)
    k_x, k_e, k_w1, k_b1, k_w2, k_b2 = jax.random.split(key, 6)

    x = jax.random.normal(k_x, (N, in_channels), dtype=jnp.float32)
    edges = jax.random.randint(k_e, (2, E), 0, N, dtype=jnp.int32)
    a_hat = build_normalized_adjacency(edges, N)

    # Weights stored (fan_in, fan_out) so the kernel computes plain x @ W.
    w1 = jax.random.normal(k_w1, (in_channels, hidden_channels),
                           dtype=jnp.float32) * (1.0 / jnp.sqrt(in_channels))
    b1 = jax.random.normal(k_b1, (1, hidden_channels), dtype=jnp.float32) * 0.01
    w2 = jax.random.normal(k_w2, (hidden_channels, out_channels),
                           dtype=jnp.float32) * (1.0 / jnp.sqrt(hidden_channels))
    b2 = jax.random.normal(k_b2, (1, out_channels), dtype=jnp.float32) * 0.01

    # NOTE: dropout (p=0.5) is identity in eval mode; kernel implements eval.
    # jit fuses the pad/bf16-cast of A/X/W with the forward (review item); for a
    # static graph, pre-pad/cast and cache A instead.
    fwd = jax.jit(gnn_forward, static_argnames=("row_tile", "k_tile", "force_tiled"))

    # Small-graph fused path (single pallas_call, A streamed once).
    out = jax.block_until_ready(fwd(a_hat, x, w1, b1, w2, b2))
    assert out.shape == (N, out_channels)

    # Large-graph K-tiled path, forced on the same small problem for validation.
    out_tiled = jax.block_until_ready(
        fwd(a_hat, x, w1, b1, w2, b2, force_tiled=True, row_tile=128, k_tile=128))
    assert out_tiled.shape == (N, out_channels)

    # Reference with the same bf16 matmul-input casting as the kernels.
    a_b, x_b = a_hat.astype(jnp.bfloat16), x.astype(jnp.bfloat16)
    w1_b, w2_b = w1.astype(jnp.bfloat16), w2.astype(jnp.bfloat16)
    xw_r = jnp.dot(x_b, w1_b, preferred_element_type=jnp.float32).astype(jnp.bfloat16)
    h_r = jnp.maximum(jnp.dot(a_b, xw_r, preferred_element_type=jnp.float32) + b1, 0.0)
    hw_r = jnp.dot(h_r.astype(jnp.bfloat16), w2_b,
                   preferred_element_type=jnp.float32).astype(jnp.bfloat16)
    z_r = jnp.dot(a_b, hw_r, preferred_element_type=jnp.float32) + b2
    ref = z_r - jax.scipy.special.logsumexp(z_r, axis=1, keepdims=True)

    # Full-f32 reference (semantic check, loose tolerance for bf16 matmuls).
    h_f = jnp.maximum(a_hat @ (x @ w1) + b1, 0.0)
    z_f = a_hat @ (h_f @ w2) + b2
    ref_f32 = z_f - jax.scipy.special.logsumexp(z_f, axis=1, keepdims=True)

    assert jnp.allclose(out, ref, atol=1e-3), "fused path mismatch vs bf16 reference"
    assert jnp.allclose(out_tiled, ref, atol=1e-3), "tiled path mismatch vs bf16 reference"
    assert jnp.allclose(out, out_tiled, atol=1e-3), "fused vs tiled mismatch"
    assert jnp.allclose(out, ref_f32, atol=5e-2), "mismatch vs f32 reference"
    assert jnp.allclose(jnp.sum(jnp.exp(out), axis=1), 1.0, atol=1e-3)

    print("KERNEL_OK")
</pallas_src>

<mosaic_0001>
module attributes {stable_mosaic.version = 11 : i64} {
  func.func @_fused_small_kernel(%arg0: memref<256x256xbf16, #tpu.memory_space<vmem>>, %arg1: memref<256x128xbf16, #tpu.memory_space<vmem>>, %arg2: memref<128x128xbf16, #tpu.memory_space<vmem>>, %arg3: memref<1x128xf32, #tpu.memory_space<vmem>>, %arg4: memref<128x128xbf16, #tpu.memory_space<vmem>>, %arg5: memref<1x128xf32, #tpu.memory_space<vmem>>, %arg6: memref<256x128xf32, #tpu.memory_space<vmem>>) attributes {dimension_semantics = [], scalar_prefetch = 0 : i64, scratch_operands = 0 : i64, tpu.core_type = #tpu.core_type<tc>} {
    %c0 = arith.constant 0 : index
    %c0_0 = arith.constant 0 : index
    %0 = vector.load %arg1[%c0, %c0_0] : memref<256x128xbf16, #tpu.memory_space<vmem>>, vector<256x128xbf16>
    %c0_1 = arith.constant 0 : index
    %c0_2 = arith.constant 0 : index
    %1 = vector.load %arg2[%c0_1, %c0_2] : memref<128x128xbf16, #tpu.memory_space<vmem>>, vector<128x128xbf16>
    %cst = arith.constant dense<0.000000e+00> : vector<256x128xf32>
    %2 = tpu.matmul %0, %1, %cst {dimension_numbers = #tpu.dot_dimension_numbers<[1], [0], [0], [1], [0, 0, 1, 1], [], []>} : vector<256x128xbf16>, vector<128x128xbf16>, vector<256x128xf32> -> vector<256x128xf32>
    %3 = arith.truncf %2 : vector<256x128xf32> to vector<256x128xbf16>
    %c0_3 = arith.constant 0 : index
    %c0_4 = arith.constant 0 : index
    %4 = vector.load %arg0[%c0_3, %c0_4] : memref<256x256xbf16, #tpu.memory_space<vmem>>, vector<256x256xbf16>
    %cst_5 = arith.constant dense<0.000000e+00> : vector<256x128xf32>
    %5 = tpu.matmul %4, %3, %cst_5 {dimension_numbers = #tpu.dot_dimension_numbers<[1], [0], [0], [1], [0, 0, 1, 1], [], []>} : vector<256x256xbf16>, vector<256x128xbf16>, vector<256x128xf32> -> vector<256x128xf32>
    %c0_6 = arith.constant 0 : index
    %c0_7 = arith.constant 0 : index
    %6 = vector.load %arg3[%c0_6, %c0_7] : memref<1x128xf32, #tpu.memory_space<vmem>>, vector<1x128xf32>
    %7 = vector.broadcast %6 : vector<1x128xf32> to vector<256x128xf32>
    %8 = arith.addf %5, %7 : vector<256x128xf32>
    %cst_8 = arith.constant 0.000000e+00 : f32
    %9 = vector.broadcast %cst_8 : f32 to vector<256x128xf32>
    %10 = arith.maximumf %8, %9 : vector<256x128xf32>
    %11 = arith.truncf %10 : vector<256x128xf32> to vector<256x128xbf16>
    %c0_9 = arith.constant 0 : index
    %c0_10 = arith.constant 0 : index
    %12 = vector.load %arg4[%c0_9, %c0_10] : memref<128x128xbf16, #tpu.memory_space<vmem>>, vector<128x128xbf16>
    %cst_11 = arith.constant dense<0.000000e+00> : vector<256x128xf32>
    %13 = tpu.matmul %11, %12, %cst_11 {dimension_numbers = #tpu.dot_dimension_numbers<[1], [0], [0], [1], [0, 0, 1, 1], [], []>} : vector<256x128xbf16>, vector<128x128xbf16>, vector<256x128xf32> -> vector<256x128xf32>
    %14 = arith.truncf %13 : vector<256x128xf32> to vector<256x128xbf16>
    %c0_12 = arith.constant 0 : index
    %c0_13 = arith.constant 0 : index
    %15 = vector.load %arg0[%c0_12, %c0_13] : memref<256x256xbf16, #tpu.memory_space<vmem>>, vector<256x256xbf16>
    %cst_14 = arith.constant dense<0.000000e+00> : vector<256x128xf32>
    %16 = tpu.matmul %15, %14, %cst_14 {dimension_numbers = #tpu.dot_dimension_numbers<[1], [0], [0], [1], [0, 0, 1, 1], [], []>} : vector<256x256xbf16>, vector<256x128xbf16>, vector<256x128xf32> -> vector<256x128xf32>
    %c0_15 = arith.constant 0 : index
    %c0_16 = arith.constant 0 : index
    %17 = vector.load %arg5[%c0_15, %c0_16] : memref<1x128xf32, #tpu.memory_space<vmem>>, vector<1x128xf32>
    %18 = vector.broadcast %17 : vector<1x128xf32> to vector<256x128xf32>
    %19 = arith.addf %16, %18 : vector<256x128xf32>
    %20 = tpu.iota {dimensions = array<i32: 1>} : vector<256x128xi32>
    %c2_i32 = arith.constant 2 : i32
    %21 = vector.broadcast %c2_i32 : i32 to vector<256x128xi32>
    %22 = arith.cmpi slt, %20, %21 : vector<256x128xi32>
    %cst_17 = arith.constant 0xFF800000 : f32
    %23 = vector.broadcast %cst_17 : f32 to vector<256x128xf32>
    %24 = arith.select %22, %19, %23 : vector<256x128xi1>, vector<256x128xf32>
    %cst_18 = arith.constant dense<0xFF800000> : vector<256xf32>
    %25 = vector.multi_reduction <maximumf>, %24, %cst_18 [1] : vector<256x128xf32> to vector<256xf32>
    %26 = vector.shape_cast %25 : vector<256xf32> to vector<256x1xf32>
    %27 = vector.broadcast %26 : vector<256x1xf32> to vector<256x128xf32>
    %28 = arith.subf %24, %27 : vector<256x128xf32>
    %29 = math.exp %28 : vector<256x128xf32>
    %cst_19 = arith.constant dense<0.000000e+00> : vector<256xf32>
    %30 = vector.multi_reduction <add>, %29, %cst_19 [1] : vector<256x128xf32> to vector<256xf32>
    %31 = vector.shape_cast %30 : vector<256xf32> to vector<256x1xf32>
    %32 = math.log %31 : vector<256x1xf32>
    %33 = arith.addf %26, %32 : vector<256x1xf32>
    %34 = vector.broadcast %33 : vector<256x1xf32> to vector<256x128xf32>
    %35 = arith.subf %19, %34 : vector<256x128xf32>
    %c0_20 = arith.constant 0 : index
    %c0_21 = arith.constant 0 : index
    %36 = vector.load %arg6[%c0_20, %c0_21] : memref<256x128xf32, #tpu.memory_space<vmem>>, vector<256x128xf32>
    tpu.vector_store %arg6[%c0_20, %c0_21], %35 {strides = array<i32>} : memref<256x128xf32, #tpu.memory_space<vmem>>, vector<256x128xf32>,
    return
  }
}

</mosaic_0001>

<llo_original>
// kernel: gnn_forward.1
$region0: #{gnn_forward.1}
  #allocation0 [shape = 'u32[]', space=smem, size = 0x4, offset = 0x4, fixed_abs, tag = 'smem constant byte address 0x4 - core index']
  #allocation1 [shape = 'u32[144,128]{1,0:T(1,128)}', space=vmem, size = 0x12000, scoped, tag = 'internal scratch']
  %s0 = inlined_call_operand.vmem [shape: bf16[256,256], index: 0, kind: input, shape index: {}]
  %s1 = inlined_call_operand.vmem [shape: bf16[256,128], index: 1, kind: input, shape index: {}]
  %s2 = inlined_call_operand.vmem [shape: bf16[128,128], index: 2, kind: input, shape index: {}]
  %s3 = inlined_call_operand.vmem [shape: f32[1,128], index: 3, kind: input, shape index: {}]
  %s4 = inlined_call_operand.vmem [shape: bf16[128,128], index: 4, kind: input, shape index: {}]
  %s5 = inlined_call_operand.vmem [shape: f32[1,128], index: 5, kind: input, shape index: {}]
  %s6 = inlined_call_operand.vmem [shape: f32[256,128], index: 6, kind: output, shape index: {}]
  %s7 = sld [smem:[#allocation0]]
  $region34: #{gnn_forward.1} parent=0
    _
  %s9 = ssub.s32 1, %s7
  %s10 = scalar_select 0, %s9, %s7
  // Predicated region
  $region2: #{gnn_forward.1} parent=0 // pred_check
    _
  $region3: #{gnn_forward.1} parent=0 // pred_check_branch
    %12 = sbr.rel (0) target = $region5
  $region4: #{gnn_forward.1} parent=0 // pred_region
    _
  $region5: #{gnn_forward.1} parent=0 // pred_fallthru
    _
  // Predicated region
  $region6: #{gnn_forward.1} parent=0 // pred_check
    _
  $region7: #{gnn_forward.1} parent=0 // pred_check_branch
    %14 = sbr.rel (0) target = $region9
  $region8: #{gnn_forward.1} parent=0 // pred_region
    _
  $region9: #{gnn_forward.1} parent=0 // pred_fallthru
    _
  // Predicated region
  $region10: #{gnn_forward.1} parent=0 // pred_check
    _
  $region11: #{gnn_forward.1} parent=0 // pred_check_branch
    %16 = sbr.rel (0) target = $region13
  $region12: #{gnn_forward.1} parent=0 // pred_region
    _
  $region13: #{gnn_forward.1} parent=0 // pred_fallthru
    _
  // Predicated region
  $region14: #{gnn_forward.1} parent=0 // pred_check
    _
  $region15: #{gnn_forward.1} parent=0 // pred_check_branch
    %18 = sbr.rel (0) target = $region17
  $region16: #{gnn_forward.1} parent=0 // pred_region
    _
  $region17: #{gnn_forward.1} parent=0 // pred_fallthru
    _
  // Predicated region
  $region18: #{gnn_forward.1} parent=0 // pred_check
    _
  $region19: #{gnn_forward.1} parent=0 // pred_check_branch
    %20 = sbr.rel (0) target = $region21
  $region20: #{gnn_forward.1} parent=0 // pred_region
    _
  $region21: #{gnn_forward.1} parent=0 // pred_fallthru
    _
  // Predicated region
  $region22: #{gnn_forward.1} parent=0 // pred_check
    _
  $region23: #{gnn_forward.1} parent=0 // pred_check_branch
    %22 = sbr.rel (0) target = $region25
  $region24: #{gnn_forward.1} parent=0 // pred_region
    _
  $region25: #{gnn_forward.1} parent=0 // pred_fallthru
    _
  %v24 = vld [vmem:[%s1] sm:$0xf]
  %v25 = vld [vmem:[%s1 + $0x4] sm:$0xf]
  %v26 = vld [vmem:[%s1 + $0x8] sm:$0xf]
  %v27 = vld [vmem:[%s1 + $0xc] sm:$0xf]
  %v28 = vld [vmem:[%s1 + $0x10] sm:$0xf]
  %v29 = vld [vmem:[%s1 + $0x14] sm:$0xf]
  %v30 = vld [vmem:[%s1 + $0x18] sm:$0xf]
  %v31 = vld [vmem:[%s1 + $0x1c] sm:$0xf]
  %v32 = vld [vmem:[%s1 + $0x20] sm:$0xf]
  %v33 = vld [vmem:[%s1 + $0x24] sm:$0xf]
  %v34 = vld [vmem:[%s1 + $0x28] sm:$0xf]
  %v35 = vld [vmem:[%s1 + $0x2c] sm:$0xf]
  %v36 = vld [vmem:[%s1 + $0x30] sm:$0xf]
  %v37 = vld [vmem:[%s1 + $0x34] sm:$0xf]
  %v38 = vld [vmem:[%s1 + $0x38] sm:$0xf]
  %v39 = vld [vmem:[%s1 + $0x3c] sm:$0xf]
  %v40 = vld [vmem:[%s1 + $0x40] sm:$0xf]
  %v41 = vld [vmem:[%s1 + $0x44] sm:$0xf]
  %v42 = vld [vmem:[%s1 + $0x48] sm:$0xf]
  %v43 = vld [vmem:[%s1 + $0x4c] sm:$0xf]
  %v44 = vld [vmem:[%s1 + $0x50] sm:$0xf]
  %v45 = vld [vmem:[%s1 + $0x54] sm:$0xf]
  %v46 = vld [vmem:[%s1 + $0x58] sm:$0xf]
  %v47 = vld [vmem:[%s1 + $0x5c] sm:$0xf]
  %v48 = vld [vmem:[%s1 + $0x60] sm:$0xf]
  %v49 = vld [vmem:[%s1 + $0x64] sm:$0xf]
  %v50 = vld [vmem:[%s1 + $0x68] sm:$0xf]
  %v51 = vld [vmem:[%s1 + $0x6c] sm:$0xf]
  %v52 = vld [vmem:[%s1 + $0x70] sm:$0xf]
  %v53 = vld [vmem:[%s1 + $0x74] sm:$0xf]
  %v54 = vld [vmem:[%s1 + $0x78] sm:$0xf]
  %v55 = vld [vmem:[%s1 + $0x7c] sm:$0xf]
  %v56 = vld [vmem:[%s2] sm:$0xf]
  %v57 = vld [vmem:[%s2 + $0x4] sm:$0xf]
  %v58 = vld [vmem:[%s2 + $0x8] sm:$0xf]
  %v59 = vld [vmem:[%s2 + $0xc] sm:$0xf]
  %v60 = vld [vmem:[%s2 + $0x10] sm:$0xf]
  %v61 = vld [vmem:[%s2 + $0x14] sm:$0xf]
  %v62 = vld [vmem:[%s2 + $0x18] sm:$0xf]
  %v63 = vld [vmem:[%s2 + $0x1c] sm:$0xf]
  %v64 = vld [vmem:[%s2 + $0x20] sm:$0xf]
  %v65 = vld [vmem:[%s2 + $0x24] sm:$0xf]
  %v66 = vld [vmem:[%s2 + $0x28] sm:$0xf]
  %v67 = vld [vmem:[%s2 + $0x2c] sm:$0xf]
  %v68 = vld [vmem:[%s2 + $0x30] sm:$0xf]
  %v69 = vld [vmem:[%s2 + $0x34] sm:$0xf]
  %v70 = vld [vmem:[%s2 + $0x38] sm:$0xf]
  %v71 = vld [vmem:[%s2 + $0x3c] sm:$0xf]
  %v104 = vunpack.c.l.b16 %v24
  %v105 = vunpack.c.l.b16 %v25
  %v106 = vunpack.c.l.b16 %v26
  %v107 = vunpack.c.l.b16 %v27
  %v108 = vunpack.c.l.b16 %v28
  %v109 = vunpack.c.l.b16 %v29
  %v110 = vunpack.c.l.b16 %v30
  %v111 = vunpack.c.l.b16 %v31
  %v112 = vunpack.c.l.b16 %v32
  %v113 = vunpack.c.l.b16 %v33
  %v114 = vunpack.c.l.b16 %v34
  %v115 = vunpack.c.l.b16 %v35
  %v116 = vunpack.c.l.b16 %v36
  %v117 = vunpack.c.l.b16 %v37
  %v118 = vunpack.c.l.b16 %v38
  %v119 = vunpack.c.l.b16 %v39
  %v120 = vunpack.c.l.b16 %v40
  %v121 = vunpack.c.l.b16 %v41
  %v122 = vunpack.c.l.b16 %v42
  %v123 = vunpack.c.l.b16 %v43
  %v124 = vunpack.c.l.b16 %v44
  %v125 = vunpack.c.l.b16 %v45
  %v126 = vunpack.c.l.b16 %v46
  %v127 = vunpack.c.l.b16 %v47
  %v128 = vunpack.c.l.b16 %v48
  %v129 = vunpack.c.l.b16 %v49
  %v130 = vunpack.c.l.b16 %v50
  %v131 = vunpack.c.l.b16 %v51
  %v132 = vunpack.c.l.b16 %v52
  %v133 = vunpack.c.l.b16 %v53
  %v134 = vunpack.c.l.b16 %v54
  %v135 = vunpack.c.l.b16 %v55
  %v136 = vpack.c.b16 %v105, %v104
  %v137 = vpack.c.b16 %v107, %v106
  %v138 = vpack.c.b16 %v109, %v108
  %v139 = vpack.c.b16 %v111, %v110
  %v140 = vpack.c.b16 %v113, %v112
  %v141 = vpack.c.b16 %v115, %v114
  %v142 = vpack.c.b16 %v117, %v116
  %v143 = vpack.c.b16 %v119, %v118
  %v144 = vpack.c.b16 %v121, %v120
  %v145 = vpack.c.b16 %v123, %v122
  %v146 = vpack.c.b16 %v125, %v124
  %v147 = vpack.c.b16 %v127, %v126
  %v148 = vpack.c.b16 %v129, %v128
  %v149 = vpack.c.b16 %v131, %v130
  %v150 = vpack.c.b16 %v133, %v132
  %v151 = vpack.c.b16 %v135, %v134
  %v184 = vunpack.c.l.b16 %v56
  %v185 = vunpack.c.l.b16 %v57
  %v186 = vunpack.c.l.b16 %v58
  %v187 = vunpack.c.l.b16 %v59
  %v188 = vunpack.c.l.b16 %v60
  %v189 = vunpack.c.l.b16 %v61
  %v190 = vunpack.c.l.b16 %v62
  %v191 = vunpack.c.l.b16 %v63
  %v192 = vunpack.c.l.b16 %v64
  %v193 = vunpack.c.l.b16 %v65
  %v194 = vunpack.c.l.b16 %v66
  %v195 = vunpack.c.l.b16 %v67
  %v196 = vunpack.c.l.b16 %v68
  %v197 = vunpack.c.l.b16 %v69
  %v198 = vunpack.c.l.b16 %v70
  %v199 = vunpack.c.l.b16 %v71
  %v200 = vpack.c.b16 %v185, %v184
  %v201 = vpack.c.b16 %v187, %v186
  %v202 = vpack.c.b16 %v189, %v188
  %v203 = vpack.c.b16 %v191, %v190
  %v204 = vpack.c.b16 %v193, %v192
  %v205 = vpack.c.b16 %v195, %v194
  %v206 = vpack.c.b16 %v197, %v196
  %v207 = vpack.c.b16 %v199, %v198
  %216 = vmatprep.subr.bf16.mxu0 0
  %217 = vmatpush1.bf16.msra.mxu0 %v200
  %218 = vmatprep.subr.bf16.mxu0 0
  %219 = vmatpush1.bf16.msra.mxu0 %v201
  %220 = vmatprep.subr.bf16.mxu0 0
  %221 = vmatpush1.bf16.msra.mxu0 %v202
  %222 = vmatprep.subr.bf16.mxu0 0
  %223 = vmatpush1.bf16.msra.mxu0 %v203
  %224 = vmatprep.subr.bf16.mxu0 0
  %225 = vmatpush1.bf16.msra.mxu0 %v204
  %226 = vmatprep.subr.bf16.mxu0 0
  %227 = vmatpush1.bf16.msra.mxu0 %v205
  %228 = vmatprep.subr.bf16.mxu0 0
  %229 = vmatpush1.bf16.msra.mxu0 %v206
  %230 = vmatprep.subr.bf16.mxu0 0
  %231 = vmatpush1.bf16.msra.mxu0 %v207
  %232 = vmatprep.subr.bf16.mxu0 0
  %233 = vmatpush1.bf16.msra.mxu0 0
  %234 = vmatprep.subr.bf16.mxu0 0
  %235 = vmatpush1.bf16.msra.mxu0 0
  %236 = vmatprep.subr.bf16.mxu0 0
  %237 = vmatpush1.bf16.msra.mxu0 0
  %238 = vmatprep.subr.bf16.mxu0 0
  %239 = vmatpush1.bf16.msra.mxu0 0
  %240 = vmatprep.subr.bf16.mxu0 0
  %241 = vmatpush1.bf16.msra.mxu0 0
  %242 = vmatprep.subr.bf16.mxu0 0
  %243 = vmatpush1.bf16.msra.mxu0 0
  %244 = vmatprep.subr.bf16.mxu0 0
  %245 = vmatpush1.bf16.msra.mxu0 0
  %246 = vmatprep.subr.bf16.mxu0 0
  %247 = vmatpush1.bf16.msra.mxu0 0
  %248 = vmatprep.mubr.bf16.mxu0 0
  %249 = vmatmul.mubr.bf16.gmra.mrb[0].mxu0 %v136
  %v250 = vpop.f32.mrb[0].mxu0
  %v251 = vadd.f32 0.0, %v250
  %v252 = vpop.f32.mrb[0].mxu0
  %v253 = vpop.f32.mrb[0].mxu0
  %v254 = vadd.f32 0.0, %v253
  %v255 = vpop.f32.mrb[0].mxu0
  %256 = vmatprep.mubr.bf16.mxu0 0
  %257 = vmatmul.mubr.bf16.gmra.mrb[0].mxu0 %v137
  %v258 = vpop.f32.mrb[0].mxu0
  %v259 = vadd.f32 0.0, %v258
  %v260 = vpop.f32.mrb[0].mxu0
  %v261 = vpop.f32.mrb[0].mxu0
  %v262 = vadd.f32 0.0, %v261
  %v263 = vpop.f32.mrb[0].mxu0
  %264 = vmatprep.mubr.bf16.mxu0 0
  %265 = vmatmul.mubr.bf16.gmra.mrb[0].mxu0 %v138
  %v266 = vpop.f32.mrb[0].mxu0
  %v267 = vadd.f32 0.0, %v266
  %v268 = vpop.f32.mrb[0].mxu0
  %v269 = vpop.f32.mrb[0].mxu0
  %v270 = vadd.f32 0.0, %v269
  %v271 = vpop.f32.mrb[0].mxu0
  %272 = vmatprep.mubr.bf16.mxu0 0
  %273 = vmatmul.mubr.bf16.gmra.mrb[0].mxu0 %v139
  %v274 = vpop.f32.mrb[0].mxu0
  %v275 = vadd.f32 0.0, %v274
  %v276 = vpop.f32.mrb[0].mxu0
  %v277 = vpop.f32.mrb[0].mxu0
  %v278 = vadd.f32 0.0, %v277
  %v279 = vpop.f32.mrb[0].mxu0
  %280 = vmatprep.mubr.bf16.mxu0 0
  %281 = vmatmul.mubr.bf16.gmra.mrb[0].mxu0 %v140
  %v282 = vpop.f32.mrb[0].mxu0
  %v283 = vadd.f32 0.0, %v282
  %v284 = vpop.f32.mrb[0].mxu0
  %v285 = vpop.f32.mrb[0].mxu0
  %v286 = vadd.f32 0.0, %v285
  %v287 = vpop.f32.mrb[0].mxu0
  %288 = vmatprep.mubr.bf16.mxu0 0
  %289 = vmatmul.mubr.bf16.gmra.mrb[0].mxu0 %v141
  %v290 = vpop.f32.mrb[0].mxu0
  %v291 = vadd.f32 0.0, %v290
  %v292 = vpop.f32.mrb[0].mxu0
  %v293 = vpop.f32.mrb[0].mxu0
  %v294 = vadd.f32 0.0, %v293
  %v295 = vpop.f32.mrb[0].mxu0
  %296 = vmatprep.mubr.bf16.mxu0 0
  %297 = vmatmul.mubr.bf16.gmra.mrb[0].mxu0 %v142
  %v298 = vpop.f32.mrb[0].mxu0
  %v299 = vadd.f32 0.0, %v298
  %v300 = vpop.f32.mrb[0].mxu0
  %v301 = vpop.f32.mrb[0].mxu0
  %v302 = vadd.f32 0.0, %v301
  %v303 = vpop.f32.mrb[0].mxu0
  %304 = vmatprep.mubr.bf16.mxu0 0
  %305 = vmatmul.mubr.bf16.gmra.mrb[0].mxu0 %v143
  %v306 = vpop.f32.mrb[0].mxu0
  %v307 = vadd.f32 0.0, %v306
  %v308 = vpop.f32.mrb[0].mxu0
  %v309 = vpop.f32.mrb[0].mxu0
  %v310 = vadd.f32 0.0, %v309
  %v311 = vpop.f32.mrb[0].mxu0
  %312 = vmatprep.mubr.bf16.mxu0 0
  %313 = vmatmul.mubr.bf16.gmra.mrb[0].mxu0 %v144
  %v314 = vpop.f32.mrb[0].mxu0
  %v315 = vadd.f32 0.0, %v314
  %v316 = vpop.f32.mrb[0].mxu0
  %v317 = vpop.f32.mrb[0].mxu0
  %v318 = vadd.f32 0.0, %v317
  %v319 = vpop.f32.mrb[0].mxu0
  %320 = vmatprep.mubr.bf16.mxu0 0
  %321 = vmatmul.mubr.bf16.gmra.mrb[0].mxu0 %v145
  %v322 = vpop.f32.mrb[0].mxu0
  %v323 = vadd.f32 0.0, %v322
  %v324 = vpop.f32.mrb[0].mxu0
  %v325 = vpop.f32.mrb[0].mxu0
  %v326 = vadd.f32 0.0, %v325
  %v327 = vpop.f32.mrb[0].mxu0
  %328 = vmatprep.mubr.bf16.mxu0 0
  %329 = vmatmul.mubr.bf16.gmra.mrb[0].mxu0 %v146
  %v330 = vpop.f32.mrb[0].mxu0
  %v331 = vadd.f32 0.0, %v330
  %v332 = vpop.f32.mrb[0].mxu0
  %v333 = vpop.f32.mrb[0].mxu0
  %v334 = vadd.f32 0.0, %v333
  %v335 = vpop.f32.mrb[0].mxu0
  %336 = vmatprep.mubr.bf16.mxu0 0
  %337 = vmatmul.mubr.bf16.gmra.mrb[0].mxu0 %v147
  %v338 = vpop.f32.mrb[0].mxu0
  %v339 = vadd.f32 0.0, %v338
  %v340 = vpop.f32.mrb[0].mxu0
  %v341 = vpop.f32.mrb[0].mxu0
  %v342 = vadd.f32 0.0, %v341
  %v343 = vpop.f32.mrb[0].mxu0
  %344 = vmatprep.mubr.bf16.mxu0 0
  %345 = vmatmul.mubr.bf16.gmra.mrb[0].mxu0 %v148
  %v346 = vpop.f32.mrb[0].mxu0
  %v347 = vadd.f32 0.0, %v346
  %v348 = vpop.f32.mrb[0].mxu0
  %v349 = vpop.f32.mrb[0].mxu0
  %v350 = vadd.f32 0.0, %v349
  %v351 = vpop.f32.mrb[0].mxu0
  %352 = vmatprep.mubr.bf16.mxu0 0
  %353 = vmatmul.mubr.bf16.gmra.mrb[0].mxu0 %v149
  %v354 = vpop.f32.mrb[0].mxu0
  %v355 = vadd.f32 0.0, %v354
  %v356 = vpop.f32.mrb[0].mxu0
  %v357 = vpop.f32.mrb[0].mxu0
  %v358 = vadd.f32 0.0, %v357
  %v359 = vpop.f32.mrb[0].mxu0
  %360 = vmatprep.mubr.bf16.mxu0 0
  %361 = vmatmul.mubr.bf16.gmra.mrb[0].mxu0 %v150
  %v362 = vpop.f32.mrb[0].mxu0
  %v363 = vadd.f32 0.0, %v362
  %v364 = vpop.f32.mrb[0].mxu0
  %v365 = vpop.f32.mrb[0].mxu0
  %v366 = vadd.f32 0.0, %v365
  %v367 = vpop.f32.mrb[0].mxu0
  %368 = vmatprep.mubr.bf16.mxu0 0
  %369 = vmatmul.mubr.bf16.gmra.mrb[0].mxu0 %v151
  %v370 = vpop.f32.mrb[0].mxu0
  %v371 = vadd.f32 0.0, %v370
  %v372 = vpop.f32.mrb[0].mxu0
  %v373 = vpop.f32.mrb[0].mxu0
  %v374 = vadd.f32 0.0, %v373
  %v375 = vpop.f32.mrb[0].mxu0
  %376 = vdwg.mxu0
  %v377 = vpack.c.bf16 %v254, %v251
  %v378 = vpack.c.bf16 %v262, %v259
  %v379 = vpack.c.bf16 %v270, %v267
  %v380 = vpack.c.bf16 %v278, %v275
  %v381 = vpack.c.bf16 %v286, %v283
  %v382 = vpack.c.bf16 %v294, %v291
  %v383 = vpack.c.bf16 %v302, %v299
  %v384 = vpack.c.bf16 %v310, %v307
  %v385 = vpack.c.bf16 %v318, %v315
  %v386 = vpack.c.bf16 %v326, %v323
  %v387 = vpack.c.bf16 %v334, %v331
  %v388 = vpack.c.bf16 %v342, %v339
  %v389 = vpack.c.bf16 %v350, %v347
  %v390 = vpack.c.bf16 %v358, %v355
  %v391 = vpack.c.bf16 %v366, %v363
  %v392 = vpack.c.bf16 %v374, %v371
  %v393 = vld [vmem:[%s0] sm:$0xff]
  %v394 = vld [vmem:[%s0 + $0x8] sm:$0xff]
  %v395 = vld [vmem:[%s0 + $0x10] sm:$0xff]
  %v396 = vld [vmem:[%s0 + $0x18] sm:$0xff]
  %v397 = vld [vmem:[%s0 + $0x20] sm:$0xff]
  %v398 = vld [vmem:[%s0 + $0x28] sm:$0xff]
  %v399 = vld [vmem:[%s0 + $0x30] sm:$0xff]
  %v400 = vld [vmem:[%s0 + $0x38] sm:$0xff]
  %v401 = vld [vmem:[%s0 + $0x40] sm:$0xff]
  %v402 = vld [vmem:[%s0 + $0x48] sm:$0xff]
  %v403 = vld [vmem:[%s0 + $0x50] sm:$0xff]
  %v404 = vld [vmem:[%s0 + $0x58] sm:$0xff]
  %v405 = vld [vmem:[%s0 + $0x60] sm:$0xff]
  %v406 = vld [vmem:[%s0 + $0x68] sm:$0xff]
  %v407 = vld [vmem:[%s0 + $0x70] sm:$0xff]
  %v408 = vld [vmem:[%s0 + $0x78] sm:$0xff]
  %v409 = vld [vmem:[%s0 + $0x80] sm:$0xff]
  %v410 = vld [vmem:[%s0 + $0x88] sm:$0xff]
  %v411 = vld [vmem:[%s0 + $0x90] sm:$0xff]
  %v412 = vld [vmem:[%s0 + $0x98] sm:$0xff]
  %v413 = vld [vmem:[%s0 + $0xa0] sm:$0xff]
  %v414 = vld [vmem:[%s0 + $0xa8] sm:$0xff]
  %v415 = vld [vmem:[%s0 + $0xb0] sm:$0xff]
  %v416 = vld [vmem:[%s0 + $0xb8] sm:$0xff]
  %v417 = vld [vmem:[%s0 + $0xc0] sm:$0xff]
  %v418 = vld [vmem:[%s0 + $0xc8] sm:$0xff]
  %v419 = vld [vmem:[%s0 + $0xd0] sm:$0xff]
  %v420 = vld [vmem:[%s0 + $0xd8] sm:$0xff]
  %v421 = vld [vmem:[%s0 + $0xe0] sm:$0xff]
  %v422 = vld [vmem:[%s0 + $0xe8] sm:$0xff]
  %v423 = vld [vmem:[%s0 + $0xf0] sm:$0xff]
  %v424 = vld [vmem:[%s0 + $0xf8] sm:$0xff]
  %v425 = vld [vmem:[%s3] sm:$0x1]
  %v427 = vlaneseq
  %v428 = vshrl.u32 %v427, 7
  %v429 = vsub.s32 0, %v428
  %v430 = vrot.slane %v425, %v429
  %v464 = vunpack.c.l.b16 %v393
  %v465 = vunpack.c.h.b16 %v393
  %v466 = vunpack.c.l.b16 %v394
  %v467 = vunpack.c.h.b16 %v394
  %v468 = vunpack.c.l.b16 %v395
  %v469 = vunpack.c.h.b16 %v395
  %v470 = vunpack.c.l.b16 %v396
  %v471 = vunpack.c.h.b16 %v396
  %v472 = vunpack.c.l.b16 %v397
  %v473 = vunpack.c.h.b16 %v397
  %v474 = vunpack.c.l.b16 %v398
  %v475 = vunpack.c.h.b16 %v398
  %v476 = vunpack.c.l.b16 %v399
  %v477 = vunpack.c.h.b16 %v399
  %v478 = vunpack.c.l.b16 %v400
  %v479 = vunpack.c.h.b16 %v400
  %v480 = vunpack.c.l.b16 %v401
  %v481 = vunpack.c.h.b16 %v401
  %v482 = vunpack.c.l.b16 %v402
  %v483 = vunpack.c.h.b16 %v402
  %v484 = vunpack.c.l.b16 %v403
  %v485 = vunpack.c.h.b16 %v403
  %v486 = vunpack.c.l.b16 %v404
  %v487 = vunpack.c.h.b16 %v404
  %v488 = vunpack.c.l.b16 %v405
  %v489 = vunpack.c.h.b16 %v405
  %v490 = vunpack.c.l.b16 %v406
  %v491 = vunpack.c.h.b16 %v406
  %v492 = vunpack.c.l.b16 %v407
  %v493 = vunpack.c.h.b16 %v407
  %v494 = vunpack.c.l.b16 %v408
  %v495 = vunpack.c.h.b16 %v408
  %v496 = vunpack.c.l.b16 %v409
  %v497 = vunpack.c.h.b16 %v409
  %v498 = vunpack.c.l.b16 %v410
  %v499 = vunpack.c.h.b16 %v410
  %v500 = vunpack.c.l.b16 %v411
  %v501 = vunpack.c.h.b16 %v411
  %v502 = vunpack.c.l.b16 %v412
  %v503 = vunpack.c.h.b16 %v412
  %v504 = vunpack.c.l.b16 %v413
  %v505 = vunpack.c.h.b16 %v413
  %v506 = vunpack.c.l.b16 %v414
  %v507 = vunpack.c.h.b16 %v414
  %v508 = vunpack.c.l.b16 %v415
  %v509 = vunpack.c.h.b16 %v415
  %v510 = vunpack.c.l.b16 %v416
  %v511 = vunpack.c.h.b16 %v416
  %v512 = vunpack.c.l.b16 %v417
  %v513 = vunpack.c.h.b16 %v417
  %v514 = vunpack.c.l.b16 %v418
  %v515 = vunpack.c.h.b16 %v418
  %v516 = vunpack.c.l.b16 %v419
  %v517 = vunpack.c.h.b16 %v419
  %v518 = vunpack.c.l.b16 %v420
  %v519 = vunpack.c.h.b16 %v420
  %v520 = vunpack.c.l.b16 %v421
  %v521 = vunpack.c.h.b16 %v421
  %v522 = vunpack.c.l.b16 %v422
  %v523 = vunpack.c.h.b16 %v422
  %v524 = vunpack.c.l.b16 %v423
  %v525 = vunpack.c.h.b16 %v423
  %v526 = vunpack.c.l.b16 %v424
  %v527 = vunpack.c.h.b16 %v424
  %v528 = vpack.c.b16 %v466, %v464
  %v529 = vpack.c.b16 %v467, %v465
  %v530 = vpack.c.b16 %v470, %v468
  %v531 = vpack.c.b16 %v471, %v469
  %v532 = vpack.c.b16 %v474, %v472
  %v533 = vpack.c.b16 %v475, %v473
  %v534 = vpack.c.b16 %v478, %v476
  %v535 = vpack.c.b16 %v479, %v477
  %v536 = vpack.c.b16 %v482, %v480
  %v537 = vpack.c.b16 %v483, %v481
  %v538 = vpack.c.b16 %v486, %v484
  %v539 = vpack.c.b16 %v487, %v485
  %v540 = vpack.c.b16 %v490, %v488
  %v541 = vpack.c.b16 %v491, %v489
  %v542 = vpack.c.b16 %v494, %v492
  %v543 = vpack.c.b16 %v495, %v493
  %v544 = vpack.c.b16 %v498, %v496
  %v545 = vpack.c.b16 %v499, %v497
  %v546 = vpack.c.b16 %v502, %v500
  %v547 = vpack.c.b16 %v503, %v501
  %v548 = vpack.c.b16 %v506, %v504
  %v549 = vpack.c.b16 %v507, %v505
  %v550 = vpack.c.b16 %v510, %v508
  %v551 = vpack.c.b16 %v511, %v509
  %v552 = vpack.c.b16 %v514, %v512
  %v553 = vpack.c.b16 %v515, %v513
  %v554 = vpack.c.b16 %v518, %v516
  %v555 = vpack.c.b16 %v519, %v517
  %v556 = vpack.c.b16 %v522, %v520
  %v557 = vpack.c.b16 %v523, %v521
  %v558 = vpack.c.b16 %v526, %v524
  %v559 = vpack.c.b16 %v527, %v525
  %592 = vmatprep.subr.bf16.mxu0 0
  %593 = vmatpush1.bf16.msra.mxu0 %v377
  %594 = vmatprep.subr.bf16.mxu0 0
  %595 = vmatpush1.bf16.msra.mxu0 %v378
  %596 = vmatprep.subr.bf16.mxu0 0
  %597 = vmatpush1.bf16.msra.mxu0 %v379
  %598 = vmatprep.subr.bf16.mxu0 0
  %599 = vmatpush1.bf16.msra.mxu0 %v380
  %600 = vmatprep.subr.bf16.mxu0 0
  %601 = vmatpush1.bf16.msra.mxu0 %v381
  %602 = vmatprep.subr.bf16.mxu0 0
  %603 = vmatpush1.bf16.msra.mxu0 %v382
  %604 = vmatprep.subr.bf16.mxu0 0
  %605 = vmatpush1.bf16.msra.mxu0 %v383
  %606 = vmatprep.subr.bf16.mxu0 0
  %607 = vmatpush1.bf16.msra.mxu0 %v384
  %608 = vmatprep.subr.bf16.mxu0 0
  %609 = vmatpush1.bf16.msra.mxu0 %v385
  %610 = vmatprep.subr.bf16.mxu0 0
  %611 = vmatpush1.bf16.msra.mxu0 %v386
  %612 = vmatprep.subr.bf16.mxu0 0
  %613 = vmatpush1.bf16.msra.mxu0 %v387
  %614 = vmatprep.subr.bf16.mxu0 0
  %615 = vmatpush1.bf16.msra.mxu0 %v388
  %616 = vmatprep.subr.bf16.mxu0 0
  %617 = vmatpush1.bf16.msra.mxu0 %v389
  %618 = vmatprep.subr.bf16.mxu0 0
  %619 = vmatpush1.bf16.msra.mxu0 %v390
  %620 = vmatprep.subr.bf16.mxu0 0
  %621 = vmatpush1.bf16.msra.mxu0 %v391
  %622 = vmatprep.subr.bf16.mxu0 0
  %623 = vmatpush1.bf16.msra.mxu0 %v392
  %624 = vmatprep.mubr.bf16.mxu0 %v529
  %625 = vmatmul.mubr.bf16.gmra.mrb[0].mxu0 %v528
  %v626 = vpop.f32.mrb[0].mxu0
  %v627 = vadd.f32 %v430, %v626
  %v628 = vpop.f32.mrb[0].mxu0
  %v629 = vpop.f32.mrb[0].mxu0
  %v630 = vadd.f32 %v430, %v629
  %v631 = vpop.f32.mrb[0].mxu0
  %632 = vmatprep.mubr.bf16.mxu0 %v531
  %633 = vmatmul.mubr.bf16.gmra.mrb[0].mxu0 %v530
  %v634 = vpop.f32.mrb[0].mxu0
  %v635 = vadd.f32 %v430, %v634
  %v636 = vpop.f32.mrb[0].mxu0
  %v637 = vpop.f32.mrb[0].mxu0
  %v638 = vadd.f32 %v430, %v637
  %v639 = vpop.f32.mrb[0].mxu0
  %640 = vmatprep.mubr.bf16.mxu0 %v533
  %641 = vmatmul.mubr.bf16.gmra.mrb[0].mxu0 %v532
  %v642 = vpop.f32.mrb[0].mxu0
  %v643 = vadd.f32 %v430, %v642
  %v644 = vpop.f32.mrb[0].mxu0
  %v645 = vpop.f32.mrb[0].mxu0
  %v646 = vadd.f32 %v430, %v645
  %v647 = vpop.f32.mrb[0].mxu0
  %648 = vmatprep.mubr.bf16.mxu0 %v535
  %649 = vmatmul.mubr.bf16.gmra.mrb[0].mxu0 %v534
  %v650 = vpop.f32.mrb[0].mxu0
  %v651 = vadd.f32 %v430, %v650
  %v652 = vpop.f32.mrb[0].mxu0
  %v653 = vpop.f32.mrb[0].mxu0
  %v654 = vadd.f32 %v430, %v653
  %v655 = vpop.f32.mrb[0].mxu0
  %656 = vmatprep.mubr.bf16.mxu0 %v537
  %657 = vmatmul.mubr.bf16.gmra.mrb[0].mxu0 %v536
  %v658 = vpop.f32.mrb[0].mxu0
  %v659 = vadd.f32 %v430, %v658
  %v660 = vpop.f32.mrb[0].mxu0
  %v661 = vpop.f32.mrb[0].mxu0
  %v662 = vadd.f32 %v430, %v661
  %v663 = vpop.f32.mrb[0].mxu0
  %664 = vmatprep.mubr.bf16.mxu0 %v539
  %665 = vmatmul.mubr.bf16.gmra.mrb[0].mxu0 %v538
  %v666 = vpop.f32.mrb[0].mxu0
  %v667 = vadd.f32 %v430, %v666
  %v668 = vpop.f32.mrb[0].mxu0
  %v669 = vpop.f32.mrb[0].mxu0
  %v670 = vadd.f32 %v430, %v669
  %v671 = vpop.f32.mrb[0].mxu0
  %672 = vmatprep.mubr.bf16.mxu0 %v541
  %673 = vmatmul.mubr.bf16.gmra.mrb[0].mxu0 %v540
  %v674 = vpop.f32.mrb[0].mxu0
  %v675 = vadd.f32 %v430, %v674
  %v676 = vpop.f32.mrb[0].mxu0
  %v677 = vpop.f32.mrb[0].mxu0
  %v678 = vadd.f32 %v430, %v677
  %v679 = vpop.f32.mrb[0].mxu0
  %680 = vmatprep.mubr.bf16.mxu0 %v543
  %681 = vmatmul.mubr.bf16.gmra.mrb[0].mxu0 %v542
  %v682 = vpop.f32.mrb[0].mxu0
  %v683 = vadd.f32 %v430, %v682
  %v684 = vpop.f32.mrb[0].mxu0
  %v685 = vpop.f32.mrb[0].mxu0
  %v686 = vadd.f32 %v430, %v685
  %v687 = vpop.f32.mrb[0].mxu0
  %688 = vmatprep.mubr.bf16.mxu0 %v545
  %689 = vmatmul.mubr.bf16.gmra.mrb[0].mxu0 %v544
  %v690 = vpop.f32.mrb[0].mxu0
  %v691 = vadd.f32 %v430, %v690
  %v692 = vpop.f32.mrb[0].mxu0
  %v693 = vpop.f32.mrb[0].mxu0
  %v694 = vadd.f32 %v430, %v693
  %v695 = vpop.f32.mrb[0].mxu0
  %696 = vmatprep.mubr.bf16.mxu0 %v547
  %697 = vmatmul.mubr.bf16.gmra.mrb[0].mxu0 %v546
  %v698 = vpop.f32.mrb[0].mxu0
  %v699 = vadd.f32 %v430, %v698
  %v700 = vpop.f32.mrb[0].mxu0
  %v701 = vpop.f32.mrb[0].mxu0
  %v702 = vadd.f32 %v430, %v701
  %v703 = vpop.f32.mrb[0].mxu0
  %704 = vmatprep.mubr.bf16.mxu0 %v549
  %705 = vmatmul.mubr.bf16.gmra.mrb[0].mxu0 %v548
  %v706 = vpop.f32.mrb[0].mxu0
  %v707 = vadd.f32 %v430, %v706
  %v708 = vpop.f32.mrb[0].mxu0
  %v709 = vpop.f32.mrb[0].mxu0
  %v710 = vadd.f32 %v430, %v709
  %v711 = vpop.f32.mrb[0].mxu0
  %712 = vmatprep.mubr.bf16.mxu0 %v551
  %713 = vmatmul.mubr.bf16.gmra.mrb[0].mxu0 %v550
  %v714 = vpop.f32.mrb[0].mxu0
  %v715 = vadd.f32 %v430, %v714
  %v716 = vpop.f32.mrb[0].mxu0
  %v717 = vpop.f32.mrb[0].mxu0
  %v718 = vadd.f32 %v430, %v717
  %v719 = vpop.f32.mrb[0].mxu0
  %720 = vmatprep.mubr.bf16.mxu0 %v553
  %721 = vmatmul.mubr.bf16.gmra.mrb[0].mxu0 %v552
  %v722 = vpop.f32.mrb[0].mxu0
  %v723 = vadd.f32 %v430, %v722
  %v724 = vpop.f32.mrb[0].mxu0
  %v725 = vpop.f32.mrb[0].mxu0
  %v726 = vadd.f32 %v430, %v725
  %v727 = vpop.f32.mrb[0].mxu0
  %728 = vmatprep.mubr.bf16.mxu0 %v555
  %729 = vmatmul.mubr.bf16.gmra.mrb[0].mxu0 %v554
  %v730 = vpop.f32.mrb[0].mxu0
  %v731 = vadd.f32 %v430, %v730
  %v732 = vpop.f32.mrb[0].mxu0
  %v733 = vpop.f32.mrb[0].mxu0
  %v734 = vadd.f32 %v430, %v733
  %v735 = vpop.f32.mrb[0].mxu0
  %736 = vmatprep.mubr.bf16.mxu0 %v557
  %737 = vmatmul.mubr.bf16.gmra.mrb[0].mxu0 %v556
  %v738 = vpop.f32.mrb[0].mxu0
  %v739 = vadd.f32 %v430, %v738
  %v740 = vpop.f32.mrb[0].mxu0
  %v741 = vpop.f32.mrb[0].mxu0
  %v742 = vadd.f32 %v430, %v741
  %v743 = vpop.f32.mrb[0].mxu0
  %744 = vmatprep.mubr.bf16.mxu0 %v559
  %745 = vmatmul.mubr.bf16.gmra.mrb[0].mxu0 %v558
  %v746 = vpop.f32.mrb[0].mxu0
  %v747 = vadd.f32 %v430, %v746
  %v748 = vpop.f32.mrb[0].mxu0
  %v749 = vpop.f32.mrb[0].mxu0
  %v750 = vadd.f32 %v430, %v749
  %v751 = vpop.f32.mrb[0].mxu0
  %752 = vdwg.mxu0
  %v753 = vmax.f32 %v627, 0.0
  %v754 = vmax.f32 %v630, 0.0
  %v755 = vmax.f32 %v635, 0.0
  %v756 = vmax.f32 %v638, 0.0
  %v757 = vmax.f32 %v643, 0.0
  %v758 = vmax.f32 %v646, 0.0
  %v759 = vmax.f32 %v651, 0.0
  %v760 = vmax.f32 %v654, 0.0
  %v761 = vmax.f32 %v659, 0.0
  %v762 = vmax.f32 %v662, 0.0
  %v763 = vmax.f32 %v667, 0.0
  %v764 = vmax.f32 %v670, 0.0
  %v765 = vmax.f32 %v675, 0.0
  %v766 = vmax.f32 %v678, 0.0
  %v767 = vmax.f32 %v683, 0.0
  %v768 = vmax.f32 %v686, 0.0
  %v769 = vmax.f32 %v691, 0.0
  %v770 = vmax.f32 %v694, 0.0
  %v771 = vmax.f32 %v699, 0.0
  %v772 = vmax.f32 %v702, 0.0
  %v773 = vmax.f32 %v707, 0.0
  %v774 = vmax.f32 %v710, 0.0
  %v775 = vmax.f32 %v715, 0.0
  %v776 = vmax.f32 %v718, 0.0
  %v777 = vmax.f32 %v723, 0.0
  %v778 = vmax.f32 %v726, 0.0
  %v779 = vmax.f32 %v731, 0.0
  %v780 = vmax.f32 %v734, 0.0
  %v781 = vmax.f32 %v739, 0.0
  %v782 = vmax.f32 %v742, 0.0
  %v783 = vmax.f32 %v747, 0.0
  %v784 = vmax.f32 %v750, 0.0
  %v785 = vpack.c.bf16 %v754, %v753
  %v786 = vpack.c.bf16 %v756, %v755
  %v787 = vpack.c.bf16 %v758, %v757
  %v788 = vpack.c.bf16 %v760, %v759
  %v789 = vpack.c.bf16 %v762, %v761
  %v790 = vpack.c.bf16 %v764, %v763
  %v791 = vpack.c.bf16 %v766, %v765
  %v792 = vpack.c.bf16 %v768, %v767
  %v793 = vpack.c.bf16 %v770, %v769
  %v794 = vpack.c.bf16 %v772, %v771
  %v795 = vpack.c.bf16 %v774, %v773
  %v796 = vpack.c.bf16 %v776, %v775
  %v797 = vpack.c.bf16 %v778, %v777
  %v798 = vpack.c.bf16 %v780, %v779
  %v799 = vpack.c.bf16 %v782, %v781
  %v800 = vpack.c.bf16 %v784, %v783
  %v801 = vld [vmem:[%s4] sm:$0xf]
  %v802 = vld [vmem:[%s4 + $0x4] sm:$0xf]
  %v803 = vld [vmem:[%s4 + $0x8] sm:$0xf]
  %v804 = vld [vmem:[%s4 + $0xc] sm:$0xf]
  %v805 = vld [vmem:[%s4 + $0x10] sm:$0xf]
  %v806 = vld [vmem:[%s4 + $0x14] sm:$0xf]
  %v807 = vld [vmem:[%s4 + $0x18] sm:$0xf]
  %v808 = vld [vmem:[%s4 + $0x1c] sm:$0xf]
  %v809 = vld [vmem:[%s4 + $0x20] sm:$0xf]
  %v810 = vld [vmem:[%s4 + $0x24] sm:$0xf]
  %v811 = vld [vmem:[%s4 + $0x28] sm:$0xf]
  %v812 = vld [vmem:[%s4 + $0x2c] sm:$0xf]
  %v813 = vld [vmem:[%s4 + $0x30] sm:$0xf]
  %v814 = vld [vmem:[%s4 + $0x34] sm:$0xf]
  %v815 = vld [vmem:[%s4 + $0x38] sm:$0xf]
  %v816 = vld [vmem:[%s4 + $0x3c] sm:$0xf]
  %v833 = vunpack.c.l.b16 %v801
  %v834 = vunpack.c.l.b16 %v802
  %v835 = vunpack.c.l.b16 %v803
  %v836 = vunpack.c.l.b16 %v804
  %v837 = vunpack.c.l.b16 %v805
  %v838 = vunpack.c.l.b16 %v806
  %v839 = vunpack.c.l.b16 %v807
  %v840 = vunpack.c.l.b16 %v808
  %v841 = vunpack.c.l.b16 %v809
  %v842 = vunpack.c.l.b16 %v810
  %v843 = vunpack.c.l.b16 %v811
  %v844 = vunpack.c.l.b16 %v812
  %v845 = vunpack.c.l.b16 %v813
  %v846 = vunpack.c.l.b16 %v814
  %v847 = vunpack.c.l.b16 %v815
  %v848 = vunpack.c.l.b16 %v816
  %v849 = vpack.c.b16 %v834, %v833
  %v850 = vpack.c.b16 %v836, %v835
  %v851 = vpack.c.b16 %v838, %v837
  %v852 = vpack.c.b16 %v840, %v839
  %v853 = vpack.c.b16 %v842, %v841
  %v854 = vpack.c.b16 %v844, %v843
  %v855 = vpack.c.b16 %v846, %v845
  %v856 = vpack.c.b16 %v848, %v847
  %865 = vmatprep.subr.bf16.mxu0 0
  %866 = vmatpush1.bf16.msra.mxu0 %v849
  %867 = vmatprep.subr.bf16.mxu0 0
  %868 = vmatpush1.bf16.msra.mxu0 %v850
  %869 = vmatprep.subr.bf16.mxu0 0
  %870 = vmatpush1.bf16.msra.mxu0 %v851
  %871 = vmatprep.subr.bf16.mxu0 0
  %872 = vmatpush1.bf16.msra.mxu0 %v852
  %873 = vmatprep.subr.bf16.mxu0 0
  %874 = vmatpush1.bf16.msra.mxu0 %v853
  %875 = vmatprep.subr.bf16.mxu0 0
  %876 = vmatpush1.bf16.msra.mxu0 %v854
  %877 = vmatprep.subr.bf16.mxu0 0
  %878 = vmatpush1.bf16.msra.mxu0 %v855
  %879 = vmatprep.subr.bf16.mxu0 0
  %880 = vmatpush1.bf16.msra.mxu0 %v856
  %881 = vmatprep.subr.bf16.mxu0 0
  %882 = vmatpush1.bf16.msra.mxu0 0
  %883 = vmatprep.subr.bf16.mxu0 0
  %884 = vmatpush1.bf16.msra.mxu0 0
  %885 = vmatprep.subr.bf16.mxu0 0
  %886 = vmatpush1.bf16.msra.mxu0 0
  %887 = vmatprep.subr.bf16.mxu0 0
  %888 = vmatpush1.bf16.msra.mxu0 0
  %889 = vmatprep.subr.bf16.mxu0 0
  %890 = vmatpush1.bf16.msra.mxu0 0
  %891 = vmatprep.subr.bf16.mxu0 0
  %892 = vmatpush1.bf16.msra.mxu0 0
  %893 = vmatprep.subr.bf16.mxu0 0
  %894 = vmatpush1.bf16.msra.mxu0 0
  %895 = vmatprep.subr.bf16.mxu0 0
  %896 = vmatpush1.bf16.msra.mxu0 0
  %897 = vmatprep.mubr.bf16.mxu0 0
  %898 = vmatmul.mubr.bf16.gmra.mrb[0].mxu0 %v785
  %v899 = vpop.f32.mrb[0].mxu0
  %v900 = vadd.f32 0.0, %v899
  %v901 = vpop.f32.mrb[0].mxu0
  %v902 = vpop.f32.mrb[0].mxu0
  %v903 = vadd.f32 0.0, %v902
  %v904 = vpop.f32.mrb[0].mxu0
  %905 = vmatprep.mubr.bf16.mxu0 0
  %906 = vmatmul.mubr.bf16.gmra.mrb[0].mxu0 %v786
  %v907 = vpop.f32.mrb[0].mxu0
  %v908 = vadd.f32 0.0, %v907
  %v909 = vpop.f32.mrb[0].mxu0
  %v910 = vpop.f32.mrb[0].mxu0
  %v911 = vadd.f32 0.0, %v910
  %v912 = vpop.f32.mrb[0].mxu0
  %913 = vmatprep.mubr.bf16.mxu0 0
  %914 = vmatmul.mubr.bf16.gmra.mrb[0].mxu0 %v787
  %v915 = vpop.f32.mrb[0].mxu0
  %v916 = vadd.f32 0.0, %v915
  %v917 = vpop.f32.mrb[0].mxu0
  %v918 = vpop.f32.mrb[0].mxu0
  %v919 = vadd.f32 0.0, %v918
  %v920 = vpop.f32.mrb[0].mxu0
  %921 = vmatprep.mubr.bf16.mxu0 0
  %922 = vmatmul.mubr.bf16.gmra.mrb[0].mxu0 %v788
  %v923 = vpop.f32.mrb[0].mxu0
  %v924 = vadd.f32 0.0, %v923
  %v925 = vpop.f32.mrb[0].mxu0
  %v926 = vpop.f32.mrb[0].mxu0
  %v927 = vadd.f32 0.0, %v926
  %v928 = vpop.f32.mrb[0].mxu0
  %929 = vmatprep.mubr.bf16.mxu0 0
  %930 = vmatmul.mubr.bf16.gmra.mrb[0].mxu0 %v789
  %v931 = vpop.f32.mrb[0].mxu0
  %v932 = vadd.f32 0.0, %v931
  %v933 = vpop.f32.mrb[0].mxu0
  %v934 = vpop.f32.mrb[0].mxu0
  %v935 = vadd.f32 0.0, %v934
  %v936 = vpop.f32.mrb[0].mxu0
  %937 = vmatprep.mubr.bf16.mxu0 0
  %938 = vmatmul.mubr.bf16.gmra.mrb[0].mxu0 %v790
  %v939 = vpop.f32.mrb[0].mxu0
  %v940 = vadd.f32 0.0, %v939
  %v941 = vpop.f32.mrb[0].mxu0
  %v942 = vpop.f32.mrb[0].mxu0
  %v943 = vadd.f32 0.0, %v942
  %v944 = vpop.f32.mrb[0].mxu0
  %945 = vmatprep.mubr.bf16.mxu0 0
  %946 = vmatmul.mubr.bf16.gmra.mrb[0].mxu0 %v791
  %v947 = vpop.f32.mrb[0].mxu0
  %v948 = vadd.f32 0.0, %v947
  %v949 = vpop.f32.mrb[0].mxu0
  %v950 = vpop.f32.mrb[0].mxu0
  %v951 = vadd.f32 0.0, %v950
  %v952 = vpop.f32.mrb[0].mxu0
  %953 = vmatprep.mubr.bf16.mxu0 0
  %954 = vmatmul.mubr.bf16.gmra.mrb[0].mxu0 %v792
  %v955 = vpop.f32.mrb[0].mxu0
  %v956 = vadd.f32 0.0, %v955
  %v957 = vpop.f32.mrb[0].mxu0
  %v958 = vpop.f32.mrb[0].mxu0
  %v959 = vadd.f32 0.0, %v958
  %v960 = vpop.f32.mrb[0].mxu0
  %961 = vmatprep.mubr.bf16.mxu0 0
  %962 = vmatmul.mubr.bf16.gmra.mrb[0].mxu0 %v793
  %v963 = vpop.f32.mrb[0].mxu0
  %v964 = vadd.f32 0.0, %v963
  %v965 = vpop.f32.mrb[0].mxu0
  %v966 = vpop.f32.mrb[0].mxu0
  %v967 = vadd.f32 0.0, %v966
  %v968 = vpop.f32.mrb[0].mxu0
  %969 = vmatprep.mubr.bf16.mxu0 0
  %970 = vmatmul.mubr.bf16.gmra.mrb[0].mxu0 %v794
  %v971 = vpop.f32.mrb[0].mxu0
  %v972 = vadd.f32 0.0, %v971
  %v973 = vpop.f32.mrb[0].mxu0
  %v974 = vpop.f32.mrb[0].mxu0
  %v975 = vadd.f32 0.0, %v974
  %v976 = vpop.f32.mrb[0].mxu0
  %977 = vmatprep.mubr.bf16.mxu0 0
  %978 = vmatmul.mubr.bf16.gmra.mrb[0].mxu0 %v795
  %v979 = vpop.f32.mrb[0].mxu0
  %v980 = vadd.f32 0.0, %v979
  %v981 = vpop.f32.mrb[0].mxu0
  %v982 = vpop.f32.mrb[0].mxu0
  %v983 = vadd.f32 0.0, %v982
  %v984 = vpop.f32.mrb[0].mxu0
  %985 = vmatprep.mubr.bf16.mxu0 0
  %986 = vmatmul.mubr.bf16.gmra.mrb[0].mxu0 %v796
  %v987 = vpop.f32.mrb[0].mxu0
  %v988 = vadd.f32 0.0, %v987
  %v989 = vpop.f32.mrb[0].mxu0
  %v990 = vpop.f32.mrb[0].mxu0
  %v991 = vadd.f32 0.0, %v990
  %v992 = vpop.f32.mrb[0].mxu0
  %993 = vmatprep.mubr.bf16.mxu0 0
  %994 = vmatmul.mubr.bf16.gmra.mrb[0].mxu0 %v797
  %v995 = vpop.f32.mrb[0].mxu0
  %v996 = vadd.f32 0.0, %v995
  %v997 = vpop.f32.mrb[0].mxu0
  %v998 = vpop.f32.mrb[0].mxu0
  %v999 = vadd.f32 0.0, %v998
  %v1000 = vpop.f32.mrb[0].mxu0
  %1001 = vmatprep.mubr.bf16.mxu0 0
  %1002 = vmatmul.mubr.bf16.gmra.mrb[0].mxu0 %v798
  %v1003 = vpop.f32.mrb[0].mxu0
  %v1004 = vadd.f32 0.0, %v1003
  %v1005 = vpop.f32.mrb[0].mxu0
  %v1006 = vpop.f32.mrb[0].mxu0
  %v1007 = vadd.f32 0.0, %v1006
  %v1008 = vpop.f32.mrb[0].mxu0
  %1009 = vmatprep.mubr.bf16.mxu0 0
  %1010 = vmatmul.mubr.bf16.gmra.mrb[0].mxu0 %v799
  %v1011 = vpop.f32.mrb[0].mxu0
  %v1012 = vadd.f32 0.0, %v1011
  %v1013 = vpop.f32.mrb[0].mxu0
  %v1014 = vpop.f32.mrb[0].mxu0
  %v1015 = vadd.f32 0.0, %v1014
  %v1016 = vpop.f32.mrb[0].mxu0
  %1017 = vmatprep.mubr.bf16.mxu0 0
  %1018 = vmatmul.mubr.bf16.gmra.mrb[0].mxu0 %v800
  %v1019 = vpop.f32.mrb[0].mxu0
  %v1020 = vadd.f32 0.0, %v1019
  %v1021 = vpop.f32.mrb[0].mxu0
  %v1022 = vpop.f32.mrb[0].mxu0
  %v1023 = vadd.f32 0.0, %v1022
  %v1024 = vpop.f32.mrb[0].mxu0
  %1025 = vdwg.mxu0
  %v1026 = vpack.c.bf16 %v903, %v900
  %v1027 = vpack.c.bf16 %v911, %v908
  %v1028 = vpack.c.bf16 %v919, %v916
  %v1029 = vpack.c.bf16 %v927, %v924
  %v1030 = vpack.c.bf16 %v935, %v932
  %v1031 = vpack.c.bf16 %v943, %v940
  %v1032 = vpack.c.bf16 %v951, %v948
  %v1033 = vpack.c.bf16 %v959, %v956
  %v1034 = vpack.c.bf16 %v967, %v964
  %v1035 = vpack.c.bf16 %v975, %v972
  %v1036 = vpack.c.bf16 %v983, %v980
  %v1037 = vpack.c.bf16 %v991, %v988
  %v1038 = vpack.c.bf16 %v999, %v996
  %v1039 = vpack.c.bf16 %v1007, %v1004
  %v1040 = vpack.c.bf16 %v1015, %v1012
  %v1041 = vpack.c.bf16 %v1023, %v1020
  %v1042 = vld [vmem:[%s5] sm:$0x1]
  %v1044 = vlaneseq
  %v1045 = vshrl.u32 %v1044, 7
  %v1046 = vsub.s32 0, %v1045
  %v1047 = vrot.slane %v1042, %v1046
  %1049 = vmatprep.subr.bf16.mxu0 0
  %1050 = vmatpush1.bf16.msra.mxu0 %v1026
  %1051 = vmatprep.subr.bf16.mxu0 0
  %1052 = vmatpush1.bf16.msra.mxu0 %v1027
  %1053 = vmatprep.subr.bf16.mxu0 0
  %1054 = vmatpush1.bf16.msra.mxu0 %v1028
  %1055 = vmatprep.subr.bf16.mxu0 0
  %1056 = vmatpush1.bf16.msra.mxu0 %v1029
  %1057 = vmatprep.subr.bf16.mxu0 0
  %1058 = vmatpush1.bf16.msra.mxu0 %v1030
  %1059 = vmatprep.subr.bf16.mxu0 0
  %1060 = vmatpush1.bf16.msra.mxu0 %v1031
  %1061 = vmatprep.subr.bf16.mxu0 0
  %1062 = vmatpush1.bf16.msra.mxu0 %v1032
  %1063 = vmatprep.subr.bf16.mxu0 0
  %1064 = vmatpush1.bf16.msra.mxu0 %v1033
  %1065 = vmatprep.subr.bf16.mxu0 0
  %1066 = vmatpush1.bf16.msra.mxu0 %v1034
  %1067 = vmatprep.subr.bf16.mxu0 0
  %1068 = vmatpush1.bf16.msra.mxu0 %v1035
  %1069 = vmatprep.subr.bf16.mxu0 0
  %1070 = vmatpush1.bf16.msra.mxu0 %v1036
  %1071 = vmatprep.subr.bf16.mxu0 0
  %1072 = vmatpush1.bf16.msra.mxu0 %v1037
  %1073 = vmatprep.subr.bf16.mxu0 0
  %1074 = vmatpush1.bf16.msra.mxu0 %v1038
  %1075 = vmatprep.subr.bf16.mxu0 0
  %1076 = vmatpush1.bf16.msra.mxu0 %v1039
  %1077 = vmatprep.subr.bf16.mxu0 0
  %1078 = vmatpush1.bf16.msra.mxu0 %v1040
  %1079 = vmatprep.subr.bf16.mxu0 0
  %1080 = vmatpush1.bf16.msra.mxu0 %v1041
  %1081 = vmatprep.mubr.bf16.mxu0 %v529
  %1082 = vmatmul.mubr.bf16.gmra.mrb[0].mxu0 %v528
  %v1083 = vpop.f32.mrb[0].mxu0
  %v1084 = vadd.f32 %v1047, %v1083
  %v1085 = vpop.f32.mrb[0].mxu0
  %v1086 = vpop.f32.mrb[0].mxu0
  %v1087 = vadd.f32 %v1047, %v1086
  %v1088 = vpop.f32.mrb[0].mxu0
  %1089 = vmatprep.mubr.bf16.mxu0 %v531
  %1090 = vmatmul.mubr.bf16.gmra.mrb[0].mxu0 %v530
  %v1091 = vpop.f32.mrb[0].mxu0
  %v1092 = vadd.f32 %v1047, %v1091
  %v1093 = vpop.f32.mrb[0].mxu0
  %v1094 = vpop.f32.mrb[0].mxu0
  %v1095 = vadd.f32 %v1047, %v1094
  %v1096 = vpop.f32.mrb[0].mxu0
  %1097 = vmatprep.mubr.bf16.mxu0 %v533
  %1098 = vmatmul.mubr.bf16.gmra.mrb[0].mxu0 %v532
  %v1099 = vpop.f32.mrb[0].mxu0
  %v1100 = vadd.f32 %v1047, %v1099
  %v1101 = vpop.f32.mrb[0].mxu0
  %v1102 = vpop.f32.mrb[0].mxu0
  %v1103 = vadd.f32 %v1047, %v1102
  %v1104 = vpop.f32.mrb[0].mxu0
  %1105 = vmatprep.mubr.bf16.mxu0 %v535
  %1106 = vmatmul.mubr.bf16.gmra.mrb[0].mxu0 %v534
  %v1107 = vpop.f32.mrb[0].mxu0
  %v1108 = vadd.f32 %v1047, %v1107
  %v1109 = vpop.f32.mrb[0].mxu0
  %v1110 = vpop.f32.mrb[0].mxu0
  %v1111 = vadd.f32 %v1047, %v1110
  %v1112 = vpop.f32.mrb[0].mxu0
  %1113 = vmatprep.mubr.bf16.mxu0 %v537
  %1114 = vmatmul.mubr.bf16.gmra.mrb[0].mxu0 %v536
  %v1115 = vpop.f32.mrb[0].mxu0
  %v1116 = vadd.f32 %v1047, %v1115
  %v1117 = vpop.f32.mrb[0].mxu0
  %v1118 = vpop.f32.mrb[0].mxu0
  %v1119 = vadd.f32 %v1047, %v1118
  %v1120 = vpop.f32.mrb[0].mxu0
  %1121 = vmatprep.mubr.bf16.mxu0 %v539
  %1122 = vmatmul.mubr.bf16.gmra.mrb[0].mxu0 %v538
  %v1123 = vpop.f32.mrb[0].mxu0
  %v1124 = vadd.f32 %v1047, %v1123
  %v1125 = vpop.f32.mrb[0].mxu0
  %v1126 = vpop.f32.mrb[0].mxu0
  %v1127 = vadd.f32 %v1047, %v1126
  %v1128 = vpop.f32.mrb[0].mxu0
  %1129 = vmatprep.mubr.bf16.mxu0 %v541
  %1130 = vmatmul.mubr.bf16.gmra.mrb[0].mxu0 %v540
  %v1131 = vpop.f32.mrb[0].mxu0
  %v1132 = vadd.f32 %v1047, %v1131
  %v1133 = vpop.f32.mrb[0].mxu0
  %v1134 = vpop.f32.mrb[0].mxu0
  %v1135 = vadd.f32 %v1047, %v1134
  %v1136 = vpop.f32.mrb[0].mxu0
  %1137 = vmatprep.mubr.bf16.mxu0 %v543
  %1138 = vmatmul.mubr.bf16.gmra.mrb[0].mxu0 %v542
  %v1139 = vpop.f32.mrb[0].mxu0
  %v1140 = vadd.f32 %v1047, %v1139
  %v1141 = vpop.f32.mrb[0].mxu0
  %v1142 = vpop.f32.mrb[0].mxu0
  %v1143 = vadd.f32 %v1047, %v1142
  %v1144 = vpop.f32.mrb[0].mxu0
  %1145 = vmatprep.mubr.bf16.mxu0 %v545
  %1146 = vmatmul.mubr.bf16.gmra.mrb[0].mxu0 %v544
  %v1147 = vpop.f32.mrb[0].mxu0
  %v1148 = vadd.f32 %v1047, %v1147
  %v1149 = vpop.f32.mrb[0].mxu0
  %v1150 = vpop.f32.mrb[0].mxu0
  %v1151 = vadd.f32 %v1047, %v1150
  %v1152 = vpop.f32.mrb[0].mxu0
  %1153 = vmatprep.mubr.bf16.mxu0 %v547
  %1154 = vmatmul.mubr.bf16.gmra.mrb[0].mxu0 %v546
  %v1155 = vpop.f32.mrb[0].mxu0
  %v1156 = vadd.f32 %v1047, %v1155
  %v1157 = vpop.f32.mrb[0].mxu0
  %v1158 = vpop.f32.mrb[0].mxu0
  %v1159 = vadd.f32 %v1047, %v1158
  %v1160 = vpop.f32.mrb[0].mxu0
  %1161 = vmatprep.mubr.bf16.mxu0 %v549
  %1162 = vmatmul.mubr.bf16.gmra.mrb[0].mxu0 %v548
  %v1163 = vpop.f32.mrb[0].mxu0
  %v1164 = vadd.f32 %v1047, %v1163
  %v1165 = vpop.f32.mrb[0].mxu0
  %v1166 = vpop.f32.mrb[0].mxu0
  %v1167 = vadd.f32 %v1047, %v1166
  %v1168 = vpop.f32.mrb[0].mxu0
  %1169 = vmatprep.mubr.bf16.mxu0 %v551
  %1170 = vmatmul.mubr.bf16.gmra.mrb[0].mxu0 %v550
  %v1171 = vpop.f32.mrb[0].mxu0
  %v1172 = vadd.f32 %v1047, %v1171
  %v1173 = vpop.f32.mrb[0].mxu0
  %v1174 = vpop.f32.mrb[0].mxu0
  %v1175 = vadd.f32 %v1047, %v1174
  %v1176 = vpop.f32.mrb[0].mxu0
  %1177 = vmatprep.mubr.bf16.mxu0 %v553
  %1178 = vmatmul.mubr.bf16.gmra.mrb[0].mxu0 %v552
  %v1179 = vpop.f32.mrb[0].mxu0
  %v1180 = vadd.f32 %v1047, %v1179
  %v1181 = vpop.f32.mrb[0].mxu0
  %v1182 = vpop.f32.mrb[0].mxu0
  %v1183 = vadd.f32 %v1047, %v1182
  %v1184 = vpop.f32.mrb[0].mxu0
  %1185 = vmatprep.mubr.bf16.mxu0 %v555
  %1186 = vmatmul.mubr.bf16.gmra.mrb[0].mxu0 %v554
  %v1187 = vpop.f32.mrb[0].mxu0
  %v1188 = vadd.f32 %v1047, %v1187
  %v1189 = vpop.f32.mrb[0].mxu0
  %v1190 = vpop.f32.mrb[0].mxu0
  %v1191 = vadd.f32 %v1047, %v1190
  %v1192 = vpop.f32.mrb[0].mxu0
  %1193 = vmatprep.mubr.bf16.mxu0 %v557
  %1194 = vmatmul.mubr.bf16.gmra.mrb[0].mxu0 %v556
  %v1195 = vpop.f32.mrb[0].mxu0
  %v1196 = vadd.f32 %v1047, %v1195
  %v1197 = vpop.f32.mrb[0].mxu0
  %v1198 = vpop.f32.mrb[0].mxu0
  %v1199 = vadd.f32 %v1047, %v1198
  %v1200 = vpop.f32.mrb[0].mxu0
  %1201 = vmatprep.mubr.bf16.mxu0 %v559
  %1202 = vmatmul.mubr.bf16.gmra.mrb[0].mxu0 %v558
  %v1203 = vpop.f32.mrb[0].mxu0
  %v1204 = vadd.f32 %v1047, %v1203
  %v1205 = vpop.f32.mrb[0].mxu0
  %v1206 = vpop.f32.mrb[0].mxu0
  %v1207 = vadd.f32 %v1047, %v1206
  %v1208 = vpop.f32.mrb[0].mxu0
  %1209 = vdwg.mxu0
  %v1210 = vlaneseq
  %v1211 = vand.u32 %v1210, 127
  %vm1212 = vcmp.lt.s32.totalorder %v1211, 2
  %v1213 = vsel %vm1212, %v1084, -inf
  %v1214 = vsel %vm1212, %v1087, -inf
  %v1215 = vsel %vm1212, %v1092, -inf
  %v1216 = vsel %vm1212, %v1095, -inf
  %v1217 = vsel %vm1212, %v1100, -inf
  %v1218 = vsel %vm1212, %v1103, -inf
  %v1219 = vsel %vm1212, %v1108, -inf
  %v1220 = vsel %vm1212, %v1111, -inf
  %v1221 = vsel %vm1212, %v1116, -inf
  %v1222 = vsel %vm1212, %v1119, -inf
  %v1223 = vsel %vm1212, %v1124, -inf
  %v1224 = vsel %vm1212, %v1127, -inf
  %v1225 = vsel %vm1212, %v1132, -inf
  %v1226 = vsel %vm1212, %v1135, -inf
  %v1227 = vsel %vm1212, %v1140, -inf
  %v1228 = vsel %vm1212, %v1143, -inf
  %v1229 = vsel %vm1212, %v1148, -inf
  %v1230 = vsel %vm1212, %v1151, -inf
  %v1231 = vsel %vm1212, %v1156, -inf
  %v1232 = vsel %vm1212, %v1159, -inf
  %v1233 = vsel %vm1212, %v1164, -inf
  %v1234 = vsel %vm1212, %v1167, -inf
  %v1235 = vsel %vm1212, %v1172, -inf
  %v1236 = vsel %vm1212, %v1175, -inf
  %v1237 = vsel %vm1212, %v1180, -inf
  %v1238 = vsel %vm1212, %v1183, -inf
  %v1239 = vsel %vm1212, %v1188, -inf
  %v1240 = vsel %vm1212, %v1191, -inf
  %v1241 = vsel %vm1212, %v1196, -inf
  %v1242 = vsel %vm1212, %v1199, -inf
  %v1243 = vsel %vm1212, %v1204, -inf
  %v1244 = vsel %vm1212, %v1207, -inf
  %1245 = vmax.xlane.f32.xlu0 %v1213
  %v1246 = vpop.xlane.xlu0 %1245
  %1247 = vmax.xlane.f32.xlu0 %v1214
  %v1248 = vpop.xlane.xlu0 %1247
  %1249 = vmax.xlane.f32.xlu0 %v1215
  %v1250 = vpop.xlane.xlu0 %1249
  %1251 = vmax.xlane.f32.xlu0 %v1216
  %v1252 = vpop.xlane.xlu0 %1251
  %1253 = vmax.xlane.f32.xlu0 %v1217
  %v1254 = vpop.xlane.xlu0 %1253
  %1255 = vmax.xlane.f32.xlu0 %v1218
  %v1256 = vpop.xlane.xlu0 %1255
  %1257 = vmax.xlane.f32.xlu0 %v1219
  %v1258 = vpop.xlane.xlu0 %1257
  %1259 = vmax.xlane.f32.xlu0 %v1220
  %v1260 = vpop.xlane.xlu0 %1259
  %1261 = vmax.xlane.f32.xlu0 %v1221
  %v1262 = vpop.xlane.xlu0 %1261
  %1263 = vmax.xlane.f32.xlu0 %v1222
  %v1264 = vpop.xlane.xlu0 %1263
  %1265 = vmax.xlane.f32.xlu0 %v1223
  %v1266 = vpop.xlane.xlu0 %1265
  %1267 = vmax.xlane.f32.xlu0 %v1224
  %v1268 = vpop.xlane.xlu0 %1267
  %1269 = vmax.xlane.f32.xlu0 %v1225
  %v1270 = vpop.xlane.xlu0 %1269
  %1271 = vmax.xlane.f32.xlu0 %v1226
  %v1272 = vpop.xlane.xlu0 %1271
  %1273 = vmax.xlane.f32.xlu0 %v1227
  %v1274 = vpop.xlane.xlu0 %1273
  %1275 = vmax.xlane.f32.xlu0 %v1228
  %v1276 = vpop.xlane.xlu0 %1275
  %1277 = vmax.xlane.f32.xlu0 %v1229
  %v1278 = vpop.xlane.xlu0 %1277
  %1279 = vmax.xlane.f32.xlu0 %v1230
  %v1280 = vpop.xlane.xlu0 %1279
  %1281 = vmax.xlane.f32.xlu0 %v1231
  %v1282 = vpop.xlane.xlu0 %1281
  %1283 = vmax.xlane.f32.xlu0 %v1232
  %v1284 = vpop.xlane.xlu0 %1283
  %1285 = vmax.xlane.f32.xlu0 %v1233
  %v1286 = vpop.xlane.xlu0 %1285
  %1287 = vmax.xlane.f32.xlu0 %v1234
  %v1288 = vpop.xlane.xlu0 %1287
  %1289 = vmax.xlane.f32.xlu0 %v1235
  %v1290 = vpop.xlane.xlu0 %1289
  %1291 = vmax.xlane.f32.xlu0 %v1236
  %v1292 = vpop.xlane.xlu0 %1291
  %1293 = vmax.xlane.f32.xlu0 %v1237
  %v1294 = vpop.xlane.xlu0 %1293
  %1295 = vmax.xlane.f32.xlu0 %v1238
  %v1296 = vpop.xlane.xlu0 %1295
  %1297 = vmax.xlane.f32.xlu0 %v1239
  %v1298 = vpop.xlane.xlu0 %1297
  %1299 = vmax.xlane.f32.xlu0 %v1240
  %v1300 = vpop.xlane.xlu0 %1299
  %1301 = vmax.xlane.f32.xlu0 %v1241
  %v1302 = vpop.xlane.xlu0 %1301
  %1303 = vmax.xlane.f32.xlu0 %v1242
  %v1304 = vpop.xlane.xlu0 %1303
  %1305 = vmax.xlane.f32.xlu0 %v1243
  %v1306 = vpop.xlane.xlu0 %1305
  %1307 = vmax.xlane.f32.xlu0 %v1244
  %v1308 = vpop.xlane.xlu0 %1307
  %v1309 = vsub.f32 %v1213, %v1246
  %v1310 = vsub.f32 %v1214, %v1248
  %v1311 = vsub.f32 %v1215, %v1250
  %v1312 = vsub.f32 %v1216, %v1252
  %v1313 = vsub.f32 %v1217, %v1254
  %v1314 = vsub.f32 %v1218, %v1256
  %v1315 = vsub.f32 %v1219, %v1258
  %v1316 = vsub.f32 %v1220, %v1260
  %v1317 = vsub.f32 %v1221, %v1262
  %v1318 = vsub.f32 %v1222, %v1264
  %v1319 = vsub.f32 %v1223, %v1266
  %v1320 = vsub.f32 %v1224, %v1268
  %v1321 = vsub.f32 %v1225, %v1270
  %v1322 = vsub.f32 %v1226, %v1272
  %v1323 = vsub.f32 %v1227, %v1274
  %v1324 = vsub.f32 %v1228, %v1276
  %v1325 = vsub.f32 %v1229, %v1278
  %v1326 = vsub.f32 %v1230, %v1280
  %v1327 = vsub.f32 %v1231, %v1282
  %v1328 = vsub.f32 %v1232, %v1284
  %v1329 = vsub.f32 %v1233, %v1286
  %v1330 = vsub.f32 %v1234, %v1288
  %v1331 = vsub.f32 %v1235, %v1290
  %v1332 = vsub.f32 %v1236, %v1292
  %v1333 = vsub.f32 %v1237, %v1294
  %v1334 = vsub.f32 %v1238, %v1296
  %v1335 = vsub.f32 %v1239, %v1298
  %v1336 = vsub.f32 %v1240, %v1300
  %v1337 = vsub.f32 %v1241, %v1302
  %v1338 = vsub.f32 %v1242, %v1304
  %v1339 = vsub.f32 %v1243, %v1306
  %v1340 = vsub.f32 %v1244, %v1308
  %v1341 = vmul.f32 %v1309, 1.442695
  %v1342 = vpow.pop %v1341
  %v1343 = vmul.f32 %v1310, 1.442695
  %v1344 = vpow.pop %v1343
  %v1345 = vmul.f32 %v1311, 1.442695
  %v1346 = vpow.pop %v1345
  %v1347 = vmul.f32 %v1312, 1.442695
  %v1348 = vpow.pop %v1347
  %v1349 = vmul.f32 %v1313, 1.442695
  %v1350 = vpow.pop %v1349
  %v1351 = vmul.f32 %v1314, 1.442695
  %v1352 = vpow.pop %v1351
  %v1353 = vmul.f32 %v1315, 1.442695
  %v1354 = vpow.pop %v1353
  %v1355 = vmul.f32 %v1316, 1.442695
  %v1356 = vpow.pop %v1355
  %v1357 = vmul.f32 %v1317, 1.442695
  %v1358 = vpow.pop %v1357
  %v1359 = vmul.f32 %v1318, 1.442695
  %v1360 = vpow.pop %v1359
  %v1361 = vmul.f32 %v1319, 1.442695
  %v1362 = vpow.pop %v1361
  %v1363 = vmul.f32 %v1320, 1.442695
  %v1364 = vpow.pop %v1363
  %v1365 = vmul.f32 %v1321, 1.442695
  %v1366 = vpow.pop %v1365
  %v1367 = vmul.f32 %v1322, 1.442695
  %v1368 = vpow.pop %v1367
  %v1369 = vmul.f32 %v1323, 1.442695
  %v1370 = vpow.pop %v1369
  %v1371 = vmul.f32 %v1324, 1.442695
  %v1372 = vpow.pop %v1371
  %v1373 = vmul.f32 %v1325, 1.442695
  %v1374 = vpow.pop %v1373
  %v1375 = vmul.f32 %v1326, 1.442695
  %v1376 = vpow.pop %v1375
  %v1377 = vmul.f32 %v1327, 1.442695
  %v1378 = vpow.pop %v1377
  %v1379 = vmul.f32 %v1328, 1.442695
  %v1380 = vpow.pop %v1379
  %v1381 = vmul.f32 %v1329, 1.442695
  %v1382 = vpow.pop %v1381
  %v1383 = vmul.f32 %v1330, 1.442695
  %v1384 = vpow.pop %v1383
  %v1385 = vmul.f32 %v1331, 1.442695
  %v1386 = vpow.pop %v1385
  %v1387 = vmul.f32 %v1332, 1.442695
  %v1388 = vpow.pop %v1387
  %v1389 = vmul.f32 %v1333, 1.442695
  %v1390 = vpow.pop %v1389
  %v1391 = vmul.f32 %v1334, 1.442695
  %v1392 = vpow.pop %v1391
  %v1393 = vmul.f32 %v1335, 1.442695
  %v1394 = vpow.pop %v1393
  %v1395 = vmul.f32 %v1336, 1.442695
  %v1396 = vpow.pop %v1395
  %v1397 = vmul.f32 %v1337, 1.442695
  %v1398 = vpow.pop %v1397
  %v1399 = vmul.f32 %v1338, 1.442695
  %v1400 = vpow.pop %v1399
  %v1401 = vmul.f32 %v1339, 1.442695
  %v1402 = vpow.pop %v1401
  %v1403 = vmul.f32 %v1340, 1.442695
  %v1404 = vpow.pop %v1403
  %1405 = vadd.xlane.f32.xlu0 %v1342
  %v1406 = vpop.xlane.xlu0 %1405
  %1407 = vadd.xlane.f32.xlu0 %v1344
  %v1408 = vpop.xlane.xlu0 %1407
  %1409 = vadd.xlane.f32.xlu0 %v1346
  %v1410 = vpop.xlane.xlu0 %1409
  %1411 = vadd.xlane.f32.xlu0 %v1348
  %v1412 = vpop.xlane.xlu0 %1411
  %1413 = vadd.xlane.f32.xlu0 %v1350
  %v1414 = vpop.xlane.xlu0 %1413
  %1415 = vadd.xlane.f32.xlu0 %v1352
  %v1416 = vpop.xlane.xlu0 %1415
  %1417 = vadd.xlane.f32.xlu0 %v1354
  %v1418 = vpop.xlane.xlu0 %1417
  %1419 = vadd.xlane.f32.xlu0 %v1356
  %v1420 = vpop.xlane.xlu0 %1419
  %1421 = vadd.xlane.f32.xlu0 %v1358
  %v1422 = vpop.xlane.xlu0 %1421
  %1423 = vadd.xlane.f32.xlu0 %v1360
  %v1424 = vpop.xlane.xlu0 %1423
  %1425 = vadd.xlane.f32.xlu0 %v1362
  %v1426 = vpop.xlane.xlu0 %1425
  %1427 = vadd.xlane.f32.xlu0 %v1364
  %v1428 = vpop.xlane.xlu0 %1427
  %1429 = vadd.xlane.f32.xlu0 %v1366
  %v1430 = vpop.xlane.xlu0 %1429
  %1431 = vadd.xlane.f32.xlu0 %v1368
  %v1432 = vpop.xlane.xlu0 %1431
  %1433 = vadd.xlane.f32.xlu0 %v1370
  %v1434 = vpop.xlane.xlu0 %1433
  %1435 = vadd.xlane.f32.xlu0 %v1372
  %v1436 = vpop.xlane.xlu0 %1435
  %1437 = vadd.xlane.f32.xlu0 %v1374
  %v1438 = vpop.xlane.xlu0 %1437
  %1439 = vadd.xlane.f32.xlu0 %v1376
  %v1440 = vpop.xlane.xlu0 %1439
  %1441 = vadd.xlane.f32.xlu0 %v1378
  %v1442 = vpop.xlane.xlu0 %1441
  %1443 = vadd.xlane.f32.xlu0 %v1380
  %v1444 = vpop.xlane.xlu0 %1443
  %1445 = vadd.xlane.f32.xlu0 %v1382
  %v1446 = vpop.xlane.xlu0 %1445
  %1447 = vadd.xlane.f32.xlu0 %v1384
  %v1448 = vpop.xlane.xlu0 %1447
  %1449 = vadd.xlane.f32.xlu0 %v1386
  %v1450 = vpop.xlane.xlu0 %1449
  %1451 = vadd.xlane.f32.xlu0 %v1388
  %v1452 = vpop.xlane.xlu0 %1451
  %1453 = vadd.xlane.f32.xlu0 %v1390
  %v1454 = vpop.xlane.xlu0 %1453
  %1455 = vadd.xlane.f32.xlu0 %v1392
  %v1456 = vpop.xlane.xlu0 %1455
  %1457 = vadd.xlane.f32.xlu0 %v1394
  %v1458 = vpop.xlane.xlu0 %1457
  %1459 = vadd.xlane.f32.xlu0 %v1396
  %v1460 = vpop.xlane.xlu0 %1459
  %1461 = vadd.xlane.f32.xlu0 %v1398
  %v1462 = vpop.xlane.xlu0 %1461
  %1463 = vadd.xlane.f32.xlu0 %v1400
  %v1464 = vpop.xlane.xlu0 %1463
  %1465 = vadd.xlane.f32.xlu0 %v1402
  %v1466 = vpop.xlane.xlu0 %1465
  %1467 = vadd.xlane.f32.xlu0 %v1404
  %v1468 = vpop.xlane.xlu0 %1467
  %v1469 = vlog2.pop %v1406
  %v1470 = vmul.f32 %v1469, 0.6931472
  %v1471 = vlog2.pop %v1408
  %v1472 = vmul.f32 %v1471, 0.6931472
  %v1473 = vlog2.pop %v1410
  %v1474 = vmul.f32 %v1473, 0.6931472
  %v1475 = vlog2.pop %v1412
  %v1476 = vmul.f32 %v1475, 0.6931472
  %v1477 = vlog2.pop %v1414
  %v1478 = vmul.f32 %v1477, 0.6931472
  %v1479 = vlog2.pop %v1416
  %v1480 = vmul.f32 %v1479, 0.6931472
  %v1481 = vlog2.pop %v1418
  %v1482 = vmul.f32 %v1481, 0.6931472
  %v1483 = vlog2.pop %v1420
  %v1484 = vmul.f32 %v1483, 0.6931472
  %v1485 = vlog2.pop %v1422
  %v1486 = vmul.f32 %v1485, 0.6931472
  %v1487 = vlog2.pop %v1424
  %v1488 = vmul.f32 %v1487, 0.6931472
  %v1489 = vlog2.pop %v1426
  %v1490 = vmul.f32 %v1489, 0.6931472
  %v1491 = vlog2.pop %v1428
  %v1492 = vmul.f32 %v1491, 0.6931472
  %v1493 = vlog2.pop %v1430
  %v1494 = vmul.f32 %v1493, 0.6931472
  %v1495 = vlog2.pop %v1432
  %v1496 = vmul.f32 %v1495, 0.6931472
  %v1497 = vlog2.pop %v1434
  %v1498 = vmul.f32 %v1497, 0.6931472
  %v1499 = vlog2.pop %v1436
  %v1500 = vmul.f32 %v1499, 0.6931472
  %v1501 = vlog2.pop %v1438
  %v1502 = vmul.f32 %v1501, 0.6931472
  %v1503 = vlog2.pop %v1440
  %v1504 = vmul.f32 %v1503, 0.6931472
  %v1505 = vlog2.pop %v1442
  %v1506 = vmul.f32 %v1505, 0.6931472
  %v1507 = vlog2.pop %v1444
  %v1508 = vmul.f32 %v1507, 0.6931472
  %v1509 = vlog2.pop %v1446
  %v1510 = vmul.f32 %v1509, 0.6931472
  %v1511 = vlog2.pop %v1448
  %v1512 = vmul.f32 %v1511, 0.6931472
  %v1513 = vlog2.pop %v1450
  %v1514 = vmul.f32 %v1513, 0.6931472
  %v1515 = vlog2.pop %v1452
  %v1516 = vmul.f32 %v1515, 0.6931472
  %v1517 = vlog2.pop %v1454
  %v1518 = vmul.f32 %v1517, 0.6931472
  %v1519 = vlog2.pop %v1456
  %v1520 = vmul.f32 %v1519, 0.6931472
  %v1521 = vlog2.pop %v1458
  %v1522 = vmul.f32 %v1521, 0.6931472
  %v1523 = vlog2.pop %v1460
  %v1524 = vmul.f32 %v1523, 0.6931472
  %v1525 = vlog2.pop %v1462
  %v1526 = vmul.f32 %v1525, 0.6931472
  %v1527 = vlog2.pop %v1464
  %v1528 = vmul.f32 %v1527, 0.6931472
  %v1529 = vlog2.pop %v1466
  %v1530 = vmul.f32 %v1529, 0.6931472
  %v1531 = vlog2.pop %v1468
  %v1532 = vmul.f32 %v1531, 0.6931472
  %v1533 = vadd.f32 %v1246, %v1470
  %v1534 = vadd.f32 %v1248, %v1472
  %v1535 = vadd.f32 %v1250, %v1474
  %v1536 = vadd.f32 %v1252, %v1476
  %v1537 = vadd.f32 %v1254, %v1478
  %v1538 = vadd.f32 %v1256, %v1480
  %v1539 = vadd.f32 %v1258, %v1482
  %v1540 = vadd.f32 %v1260, %v1484
  %v1541 = vadd.f32 %v1262, %v1486
  %v1542 = vadd.f32 %v1264, %v1488
  %v1543 = vadd.f32 %v1266, %v1490
  %v1544 = vadd.f32 %v1268, %v1492
  %v1545 = vadd.f32 %v1270, %v1494
  %v1546 = vadd.f32 %v1272, %v1496
  %v1547 = vadd.f32 %v1274, %v1498
  %v1548 = vadd.f32 %v1276, %v1500
  %v1549 = vadd.f32 %v1278, %v1502
  %v1550 = vadd.f32 %v1280, %v1504
  %v1551 = vadd.f32 %v1282, %v1506
  %v1552 = vadd.f32 %v1284, %v1508
  %v1553 = vadd.f32 %v1286, %v1510
  %v1554 = vadd.f32 %v1288, %v1512
  %v1555 = vadd.f32 %v1290, %v1514
  %v1556 = vadd.f32 %v1292, %v1516
  %v1557 = vadd.f32 %v1294, %v1518
  %v1558 = vadd.f32 %v1296, %v1520
  %v1559 = vadd.f32 %v1298, %v1522
  %v1560 = vadd.f32 %v1300, %v1524
  %v1561 = vadd.f32 %v1302, %v1526
  %v1562 = vadd.f32 %v1304, %v1528
  %v1563 = vadd.f32 %v1306, %v1530
  %v1564 = vadd.f32 %v1308, %v1532
  %v1565 = vsub.f32 %v1084, %v1533
  %v1566 = vsub.f32 %v1087, %v1534
  %v1567 = vsub.f32 %v1092, %v1535
  %v1568 = vsub.f32 %v1095, %v1536
  %v1569 = vsub.f32 %v1100, %v1537
  %v1570 = vsub.f32 %v1103, %v1538
  %v1571 = vsub.f32 %v1108, %v1539
  %v1572 = vsub.f32 %v1111, %v1540
  %v1573 = vsub.f32 %v1116, %v1541
  %v1574 = vsub.f32 %v1119, %v1542
  %v1575 = vsub.f32 %v1124, %v1543
  %v1576 = vsub.f32 %v1127, %v1544
  %v1577 = vsub.f32 %v1132, %v1545
  %v1578 = vsub.f32 %v1135, %v1546
  %v1579 = vsub.f32 %v1140, %v1547
  %v1580 = vsub.f32 %v1143, %v1548
  %v1581 = vsub.f32 %v1148, %v1549
  %v1582 = vsub.f32 %v1151, %v1550
  %v1583 = vsub.f32 %v1156, %v1551
  %v1584 = vsub.f32 %v1159, %v1552
  %v1585 = vsub.f32 %v1164, %v1553
  %v1586 = vsub.f32 %v1167, %v1554
  %v1587 = vsub.f32 %v1172, %v1555
  %v1588 = vsub.f32 %v1175, %v1556
  %v1589 = vsub.f32 %v1180, %v1557
  %v1590 = vsub.f32 %v1183, %v1558
  %v1591 = vsub.f32 %v1188, %v1559
  %v1592 = vsub.f32 %v1191, %v1560
  %v1593 = vsub.f32 %v1196, %v1561
  %v1594 = vsub.f32 %v1199, %v1562
  %v1595 = vsub.f32 %v1204, %v1563
  %v1596 = vsub.f32 %v1207, %v1564
  %1597 = vst [vmem:[%s6] sm:$0xff] %v1565
  %1598 = vst [vmem:[%s6 + $0x8] sm:$0xff] %v1566
  %1599 = vst [vmem:[%s6 + $0x10] sm:$0xff] %v1567
  %1600 = vst [vmem:[%s6 + $0x18] sm:$0xff] %v1568
  %1601 = vst [vmem:[%s6 + $0x20] sm:$0xff] %v1569
  %1602 = vst [vmem:[%s6 + $0x28] sm:$0xff] %v1570
  %1603 = vst [vmem:[%s6 + $0x30] sm:$0xff] %v1571
  %1604 = vst [vmem:[%s6 + $0x38] sm:$0xff] %v1572
  %1605 = vst [vmem:[%s6 + $0x40] sm:$0xff] %v1573
  %1606 = vst [vmem:[%s6 + $0x48] sm:$0xff] %v1574
  %1607 = vst [vmem:[%s6 + $0x50] sm:$0xff] %v1575
  %1608 = vst [vmem:[%s6 + $0x58] sm:$0xff] %v1576
  %1609 = vst [vmem:[%s6 + $0x60] sm:$0xff] %v1577
  %1610 = vst [vmem:[%s6 + $0x68] sm:$0xff] %v1578
  %1611 = vst [vmem:[%s6 + $0x70] sm:$0xff] %v1579
  %1612 = vst [vmem:[%s6 + $0x78] sm:$0xff] %v1580
  %1613 = vst [vmem:[%s6 + $0x80] sm:$0xff] %v1581
  %1614 = vst [vmem:[%s6 + $0x88] sm:$0xff] %v1582
  %1615 = vst [vmem:[%s6 + $0x90] sm:$0xff] %v1583
  %1616 = vst [vmem:[%s6 + $0x98] sm:$0xff] %v1584
  %1617 = vst [vmem:[%s6 + $0xa0] sm:$0xff] %v1585
  %1618 = vst [vmem:[%s6 + $0xa8] sm:$0xff] %v1586
  %1619 = vst [vmem:[%s6 + $0xb0] sm:$0xff] %v1587
  %1620 = vst [vmem:[%s6 + $0xb8] sm:$0xff] %v1588
  %1621 = vst [vmem:[%s6 + $0xc0] sm:$0xff] %v1589
  %1622 = vst [vmem:[%s6 + $0xc8] sm:$0xff] %v1590
  %1623 = vst [vmem:[%s6 + $0xd0] sm:$0xff] %v1591
  %1624 = vst [vmem:[%s6 + $0xd8] sm:$0xff] %v1592
  %1625 = vst [vmem:[%s6 + $0xe0] sm:$0xff] %v1593
  %1626 = vst [vmem:[%s6 + $0xe8] sm:$0xff] %v1594
  %1627 = vst [vmem:[%s6 + $0xf0] sm:$0xff] %v1595
  %1628 = vst [vmem:[%s6 + $0xf8] sm:$0xff] %v1596
  // Predicated region
  $region26: #{gnn_forward.1} parent=0 // pred_check
    _
  $region27: #{gnn_forward.1} parent=0 // pred_check_branch
    %1630 = sbr.rel (0) target = $region29
  $region28: #{gnn_forward.1} parent=0 // pred_region
    _
  $region29: #{gnn_forward.1} parent=0 // pred_fallthru
    _
  // Predicated region
  $region30: #{gnn_forward.1} parent=0 // pred_check
    _
  $region31: #{gnn_forward.1} parent=0 // pred_check_branch
    %1632 = sbr.rel (0) target = $region33
  $region32: #{gnn_forward.1} parent=0 // pred_region
    _
  $region33: #{gnn_forward.1} parent=0 // pred_fallthru
    _

</llo_original>
